<compile_context>
chip_gen: v7x
topology: tpu7x:2x2x1
jax: 0.10.0
libtpu: 0.0.40
codegen_flags: <defaults>
</compile_context>

<pallas_src>
import jax
import jax.numpy as jnp
from jax import lax
from jax.experimental import pallas as pl
from jax.experimental.pallas import tpu as pltpu

# ----------------------- configuration (small, consistent shapes) ------------------
BS = 2
SEQ_LEN = 16
PRED_LEN = 8
ENC_IN = 4                                 # channels
PERIOD_LEN = 4
SEQ_LEN_NEW = SEQ_LEN // PERIOD_LEN        # 4
PRED_LEN_NEW = PRED_LEN // PERIOD_LEN      # 2
EPS = 1e-5
HID = 512                                  # per-Linear hidden width (fixed in module)

M_ROWS = BS * ENC_IN                       # 8   (one matmul row per (batch, channel))
N_HID = 2 * HID                            # 1024 per-branch hidden width


def _vmem_specs(n):
    return [pl.BlockSpec(memory_space=pltpu.MemorySpace.VMEM) for _ in range(n)]


# ----------------------- fused 'norm' kernel ---------------------------------------
def san_norm_kernel(x_ref,
                    wm_in_ref, wm_raw_ref, bm_hid_ref, wm_out_ref, bm_out_ref,
                    ws_in_ref, ws_raw_ref, bs_hid_ref, ws_out_ref, bs_out_ref,
                    wgt_ref, norm_ref, pred_ref):
    # Column layout: time on sublanes, m = b*ENC_IN + d on lanes (no input transpose).
    xcols = jnp.concatenate([x_ref[b] for b in range(BS)], axis=1)       # (L, M)

    # ---- per-period statistics + normalization (two-pass, unbiased like torch.std)
    norm_parts, mean_parts, std_parts = [], [], []
    for g in range(SEQ_LEN_NEW):                                         # Ls = 4, unrolled
        seg = xcols[g * PERIOD_LEN:(g + 1) * PERIOD_LEN, :]              # (period, M)
        mu = jnp.mean(seg, axis=0, keepdims=True)                        # (1, M)
        var = jnp.sum((seg - mu) ** 2, axis=0, keepdims=True) / (PERIOD_LEN - 1)
        sd = jnp.sqrt(var)
        norm_parts.append((seg - mu) / (sd + EPS))
        mean_parts.append(mu)
        std_parts.append(sd)
    norm_cols = jnp.concatenate(norm_parts, axis=0)                      # (L, M)
    mean_cols = jnp.concatenate(mean_parts, axis=0)                      # (Ls, M)
    std_cols = jnp.concatenate(std_parts, axis=0)                        # (Ls, M)
    ma_row = jnp.mean(xcols, axis=0, keepdims=True)                      # (1, M)

    # normalized input: one full-ref store in (BS, L, D) layout
    norm_ref[...] = jnp.stack(
        [norm_cols[:, b * ENC_IN:(b + 1) * ENC_IN] for b in range(BS)], axis=0)

    # ---- dense per-branch MLPs; K-major LHS consumed directly (no transpose)
    dn = (((0,), (0,)), ((), ()))                                        # contract dim 0 / dim 0

    # mean branch: inputs (mean - mean_all) and (x - mean_all); activation tanh
    h_m = jnp.concatenate(
        [lax.dot_general(mean_cols - ma_row, wm_in_ref[...], dn,
                         preferred_element_type=jnp.float32),            # (M, 512)
         lax.dot_general(xcols - ma_row, wm_raw_ref[...], dn,
                         preferred_element_type=jnp.float32)],           # (M, 512)
        axis=1)                                                          # (M, 1024)
    h_m = jnp.tanh(h_m + bm_hid_ref[...])
    out_m = (jnp.dot(h_m, wm_out_ref[...], preferred_element_type=jnp.float32)
             + bm_out_ref[...])                                          # (M, P)

    # std branch: inputs std and x; activation relu, final relu
    h_s = jnp.concatenate(
        [lax.dot_general(std_cols, ws_in_ref[...], dn,
                         preferred_element_type=jnp.float32),
         lax.dot_general(xcols, ws_raw_ref[...], dn,
                         preferred_element_type=jnp.float32)],
        axis=1)                                                          # (M, 1024)
    h_s = jnp.maximum(h_s + bs_hid_ref[...], 0.0)
    out_s = jnp.maximum(
        jnp.dot(h_s, ws_out_ref[...], preferred_element_type=jnp.float32)
        + bs_out_ref[...], 0.0)                                          # (M, P)

    # ---- epilogue: weight / mean_all applied once in (P, M) lane layout, one store
    w = wgt_ref[...]                                                     # (2, D)
    w0 = jnp.concatenate([w[0:1, :]] * BS, axis=1)                       # (1, M)
    w1 = jnp.concatenate([w[1:2, :]] * BS, axis=1)                       # (1, M)
    mean_pred = out_m.T * w0 + ma_row * w1                               # (P, M)
    std_pred = out_s.T                                                   # (P, M)
    pred_ref[...] = jnp.concatenate(
        [jnp.stack([mean_pred[:, b * ENC_IN:(b + 1) * ENC_IN] for b in range(BS)], axis=0),
         jnp.stack([std_pred[:, b * ENC_IN:(b + 1) * ENC_IN] for b in range(BS)], axis=0)],
        axis=2)                                                          # (BS, P, 2D)


# ----------------------- 'denorm' kernel -------------------------------------------
def san_denorm_kernel(x_ref, sp_ref, o_ref):
    # x_ref: (BS, PRED_LEN, D); sp_ref: (BS, PRED_LEN_NEW, 2D)
    x = x_ref[...]
    sp = sp_ref[...]
    mean = sp[:, :, :ENC_IN]                                             # (BS, Pn, D)
    std = sp[:, :, ENC_IN:]                                              # (BS, Pn, D)
    parts = []
    for g in range(PRED_LEN_NEW):                                        # Pn = 2, unrolled
        seg = x[:, g * PERIOD_LEN:(g + 1) * PERIOD_LEN, :]               # (BS, period, D)
        parts.append(seg * (std[:, g:g + 1, :] + EPS) + mean[:, g:g + 1, :])
    o_ref[...] = jnp.concatenate(parts, axis=1)                          # one full store


# ----------------------- parameter init (deterministic, synthetic) -----------------
def init_params(key):
    ks = jax.random.split(key, 6)

    def lin(k, out_f, in_f, scale=0.1):
        kw, kb = jax.random.split(k)
        w = jax.random.normal(kw, (out_f, in_f), jnp.float32) * scale
        b = jax.random.normal(kb, (out_f,), jnp.float32) * scale
        return w, b

    params = {}
    for i, name in enumerate(["mean", "std"]):
        wi, bi = lin(ks[3 * i + 0], HID, SEQ_LEN_NEW)
        wr, br = lin(ks[3 * i + 1], HID, SEQ_LEN)
        wo, bo = lin(ks[3 * i + 2], PRED_LEN_NEW, 2 * HID)
        params[name] = dict(w_in=wi, b_in=bi, w_raw=wr, b_raw=br, w_out=wo, b_out=bo)
    # nn.Parameter(torch.ones(2, channels))
    params["weight"] = jnp.ones((2, ENC_IN), jnp.float32)
    return params


def build_kernel_params(params):
    """One-time host-side prep: per-Linear dense transposed weights (no zero padding)."""
    def branch(p):
        return dict(
            w_in_T=jnp.asarray(p["w_in"].T, jnp.float32),                    # (Ls, 512)
            w_raw_T=jnp.asarray(p["w_raw"].T, jnp.float32),                  # (L, 512)
            b_hid=jnp.concatenate([p["b_in"], p["b_raw"]]).reshape(1, -1),   # (1, 1024)
            w_out_T=jnp.asarray(p["w_out"].T, jnp.float32),                  # (1024, P)
            b_out=jnp.asarray(p["b_out"]).reshape(1, -1),                    # (1, P)
        )
    return dict(mean=branch(params["mean"]), std=branch(params["std"]),
                weight=jnp.asarray(params["weight"], jnp.float32))


# ----------------------- SAN forward: mode='norm' -----------------------------------
def san_normalize(x, kp):
    m, s = kp["mean"], kp["std"]
    return pl.pallas_call(
        san_norm_kernel,
        out_shape=(
            jax.ShapeDtypeStruct((BS, SEQ_LEN, ENC_IN), jnp.float32),
            jax.ShapeDtypeStruct((BS, PRED_LEN_NEW, 2 * ENC_IN), jnp.float32),
        ),
        in_specs=_vmem_specs(12),
        out_specs=tuple(_vmem_specs(2)),
        cost_estimate=pl.CostEstimate(
            flops=393_216,              # 2*8*20*512*2 + 2*8*1024*2*2
            transcendentals=8 * N_HID,  # tanh on the mean-branch hidden slab only
            bytes_accessed=110_000,     # ~96 KB dense weights + biases + x + outputs
        ),
    )(x,
      m["w_in_T"], m["w_raw_T"], m["b_hid"], m["w_out_T"], m["b_out"],
      s["w_in_T"], s["w_raw_T"], s["b_hid"], s["w_out_T"], s["b_out"],
      kp["weight"])


# ----------------------- SAN forward: mode='denorm' ---------------------------------
def san_denormalize(x, station_pred):
    return pl.pallas_call(
        san_denorm_kernel,
        out_shape=jax.ShapeDtypeStruct(x.shape, jnp.float32),
        in_specs=_vmem_specs(2),
        out_specs=pl.BlockSpec(memory_space=pltpu.MemorySpace.VMEM),
    )(x, station_pred)


# ----------------------- pure-JAX reference (for verification) ----------------------
def san_normalize_ref(x, params):
    bs, L, D = x.shape
    x4 = x.reshape(bs, SEQ_LEN_NEW, PERIOD_LEN, D)
    mean = jnp.mean(x4, axis=2, keepdims=True)
    std = jnp.sqrt(jnp.sum((x4 - mean) ** 2, axis=2, keepdims=True) / (PERIOD_LEN - 1))
    norm = (x4 - mean) / (std + EPS)
    mean_all = jnp.mean(x, axis=1, keepdims=True)

    def mlp(xi, xr, p, mode):
        xi = jnp.transpose(xi, (0, 2, 1))
        xr = jnp.transpose(xr, (0, 2, 1))
        hp = jax.lax.Precision.HIGHEST
        h1 = jnp.einsum("bdl,hl->bdh", xi, p["w_in"], precision=hp) + p["b_in"]
        h2 = jnp.einsum("bdl,hl->bdh", xr, p["w_raw"], precision=hp) + p["b_raw"]
        h = jnp.concatenate([h1, h2], axis=-1)
        h = jnp.tanh(h) if mode == "mean" else jax.nn.relu(h)
        o = jnp.einsum("bdh,ph->bdp", h, p["w_out"], precision=hp) + p["b_out"]
        if mode == "std":
            o = jax.nn.relu(o)
        return jnp.transpose(o, (0, 2, 1))

    om = (mlp(mean[:, :, 0, :] - mean_all, x - mean_all, params["mean"], "mean")
          * params["weight"][0] + mean_all * params["weight"][1])
    os = mlp(std[:, :, 0, :], x, params["std"], "std")
    outputs = jnp.concatenate([om, os], axis=-1)
    return norm.reshape(bs, L, D), outputs[:, -PRED_LEN_NEW:, :]


def san_denormalize_ref(x, station_pred):
    bs, L, D = x.shape
    x4 = x.reshape(bs, -1, PERIOD_LEN, D)
    mean = station_pred[:, :, :ENC_IN][:, :, None, :]
    std = station_pred[:, :, ENC_IN:][:, :, None, :]
    return (x4 * (std + EPS) + mean).reshape(bs, L, D)


# ----------------------- main --------------------------------------------------------
if __name__ == "__main__":
    key = jax.random.PRNGKey(0)
    kx, kp, kd = jax.random.split(key, 3)
    params = init_params(kp)
    kparams = build_kernel_params(params)
    batch_x = jax.random.normal(kx, (BS, SEQ_LEN, ENC_IN), jnp.float32)

    norm_fn = jax.jit(lambda x: san_normalize(x, kparams))
    norm_input, station_pred = norm_fn(batch_x)
    jax.block_until_ready((norm_input, station_pred))

    norm_ref, pred_ref = san_normalize_ref(batch_x, params)
    assert jnp.allclose(norm_input, norm_ref, atol=1e-3, rtol=1e-3), "norm_input mismatch"
    assert jnp.allclose(station_pred, pred_ref, atol=1e-3, rtol=1e-3), "station_pred mismatch"

    # exercise the 'denorm' branch as well
    future_x = jax.random.normal(kd, (BS, PRED_LEN, ENC_IN), jnp.float32)
    denorm_fn = jax.jit(san_denormalize)
    denorm_out = denorm_fn(future_x, station_pred)
    jax.block_until_ready(denorm_out)
    denorm_ref = san_denormalize_ref(future_x, pred_ref)
    assert jnp.allclose(denorm_out, denorm_ref, atol=1e-3, rtol=1e-3), "denorm mismatch"

    print("KERNEL_OK")
</pallas_src>

<mosaic_0001>
module attributes {stable_mosaic.version = 11 : i64} {
  func.func @san_norm_kernel(%arg0: memref<2x16x4xf32, #tpu.memory_space<vmem>>, %arg1: memref<4x512xf32, #tpu.memory_space<vmem>>, %arg2: memref<16x512xf32, #tpu.memory_space<vmem>>, %arg3: memref<1x1024xf32, #tpu.memory_space<vmem>>, %arg4: memref<1024x2xf32, #tpu.memory_space<vmem>>, %arg5: memref<1x2xf32, #tpu.memory_space<vmem>>, %arg6: memref<4x512xf32, #tpu.memory_space<vmem>>, %arg7: memref<16x512xf32, #tpu.memory_space<vmem>>, %arg8: memref<1x1024xf32, #tpu.memory_space<vmem>>, %arg9: memref<1024x2xf32, #tpu.memory_space<vmem>>, %arg10: memref<1x2xf32, #tpu.memory_space<vmem>>, %arg11: memref<2x4xf32, #tpu.memory_space<vmem>>, %arg12: memref<2x16x4xf32, #tpu.memory_space<vmem>>, %arg13: memref<2x2x8xf32, #tpu.memory_space<vmem>>) attributes {dimension_semantics = [], scalar_prefetch = 0 : i64, scratch_operands = 0 : i64, tpu.core_type = #tpu.core_type<tc>} {
    %c0 = arith.constant 0 : index
    %c0_0 = arith.constant 0 : index
    %c0_1 = arith.constant 0 : index
    %0 = vector.load %arg0[%c0, %c0_0, %c0_1] : memref<2x16x4xf32, #tpu.memory_space<vmem>>, vector<1x16x4xf32>
    %1 = vector.shape_cast %0 : vector<1x16x4xf32> to vector<16x4xf32>
    %c1 = arith.constant 1 : index
    %c0_2 = arith.constant 0 : index
    %c0_3 = arith.constant 0 : index
    %2 = vector.load %arg0[%c1, %c0_2, %c0_3] : memref<2x16x4xf32, #tpu.memory_space<vmem>>, vector<1x16x4xf32>
    %3 = vector.shape_cast %2 : vector<1x16x4xf32> to vector<16x4xf32>
    %4 = tpu.concatenate %1, %3 in 1 : vector<16x4xf32>, vector<16x4xf32> -> vector<16x8xf32>
    %5 = vector.extract_strided_slice %4 {offsets = [0, 0], sizes = [4, 8], strides = [1, 1]} : vector<16x8xf32> to vector<4x8xf32>
    %cst = arith.constant dense<0.000000e+00> : vector<8xf32>
    %6 = vector.multi_reduction <add>, %5, %cst [0] : vector<4x8xf32> to vector<8xf32>
    %7 = vector.shape_cast %6 : vector<8xf32> to vector<1x8xf32>
    %cst_4 = arith.constant 4.000000e+00 : f32
    %8 = vector.broadcast %cst_4 : f32 to vector<1x8xf32>
    %9 = arith.divf %7, %8 : vector<1x8xf32>
    %10 = vector.broadcast %9 : vector<1x8xf32> to vector<4x8xf32>
    %11 = arith.subf %5, %10 : vector<4x8xf32>
    %12 = arith.mulf %11, %11 : vector<4x8xf32>
    %cst_5 = arith.constant dense<0.000000e+00> : vector<8xf32>
    %13 = vector.multi_reduction <add>, %12, %cst_5 [0] : vector<4x8xf32> to vector<8xf32>
    %14 = vector.shape_cast %13 : vector<8xf32> to vector<1x8xf32>
    %cst_6 = arith.constant 3.000000e+00 : f32
    %15 = vector.broadcast %cst_6 : f32 to vector<1x8xf32>
    %16 = arith.divf %14, %15 : vector<1x8xf32>
    %17 = math.sqrt %16 : vector<1x8xf32>
    %18 = vector.broadcast %9 : vector<1x8xf32> to vector<4x8xf32>
    %19 = arith.subf %5, %18 : vector<4x8xf32>
    %cst_7 = arith.constant 9.99999974E-6 : f32
    %20 = vector.broadcast %cst_7 : f32 to vector<1x8xf32>
    %21 = arith.addf %17, %20 : vector<1x8xf32>
    %22 = vector.broadcast %21 : vector<1x8xf32> to vector<4x8xf32>
    %23 = arith.divf %19, %22 : vector<4x8xf32>
    %24 = vector.extract_strided_slice %4 {offsets = [4, 0], sizes = [4, 8], strides = [1, 1]} : vector<16x8xf32> to vector<4x8xf32>
    %cst_8 = arith.constant dense<0.000000e+00> : vector<8xf32>
    %25 = vector.multi_reduction <add>, %24, %cst_8 [0] : vector<4x8xf32> to vector<8xf32>
    %26 = vector.shape_cast %25 : vector<8xf32> to vector<1x8xf32>
    %cst_9 = arith.constant 4.000000e+00 : f32
    %27 = vector.broadcast %cst_9 : f32 to vector<1x8xf32>
    %28 = arith.divf %26, %27 : vector<1x8xf32>
    %29 = vector.broadcast %28 : vector<1x8xf32> to vector<4x8xf32>
    %30 = arith.subf %24, %29 : vector<4x8xf32>
    %31 = arith.mulf %30, %30 : vector<4x8xf32>
    %cst_10 = arith.constant dense<0.000000e+00> : vector<8xf32>
    %32 = vector.multi_reduction <add>, %31, %cst_10 [0] : vector<4x8xf32> to vector<8xf32>
    %33 = vector.shape_cast %32 : vector<8xf32> to vector<1x8xf32>
    %cst_11 = arith.constant 3.000000e+00 : f32
    %34 = vector.broadcast %cst_11 : f32 to vector<1x8xf32>
    %35 = arith.divf %33, %34 : vector<1x8xf32>
    %36 = math.sqrt %35 : vector<1x8xf32>
    %37 = vector.broadcast %28 : vector<1x8xf32> to vector<4x8xf32>
    %38 = arith.subf %24, %37 : vector<4x8xf32>
    %cst_12 = arith.constant 9.99999974E-6 : f32
    %39 = vector.broadcast %cst_12 : f32 to vector<1x8xf32>
    %40 = arith.addf %36, %39 : vector<1x8xf32>
    %41 = vector.broadcast %40 : vector<1x8xf32> to vector<4x8xf32>
    %42 = arith.divf %38, %41 : vector<4x8xf32>
    %43 = vector.extract_strided_slice %4 {offsets = [8, 0], sizes = [4, 8], strides = [1, 1]} : vector<16x8xf32> to vector<4x8xf32>
    %cst_13 = arith.constant dense<0.000000e+00> : vector<8xf32>
    %44 = vector.multi_reduction <add>, %43, %cst_13 [0] : vector<4x8xf32> to vector<8xf32>
    %45 = vector.shape_cast %44 : vector<8xf32> to vector<1x8xf32>
    %cst_14 = arith.constant 4.000000e+00 : f32
    %46 = vector.broadcast %cst_14 : f32 to vector<1x8xf32>
    %47 = arith.divf %45, %46 : vector<1x8xf32>
    %48 = vector.broadcast %47 : vector<1x8xf32> to vector<4x8xf32>
    %49 = arith.subf %43, %48 : vector<4x8xf32>
    %50 = arith.mulf %49, %49 : vector<4x8xf32>
    %cst_15 = arith.constant dense<0.000000e+00> : vector<8xf32>
    %51 = vector.multi_reduction <add>, %50, %cst_15 [0] : vector<4x8xf32> to vector<8xf32>
    %52 = vector.shape_cast %51 : vector<8xf32> to vector<1x8xf32>
    %cst_16 = arith.constant 3.000000e+00 : f32
    %53 = vector.broadcast %cst_16 : f32 to vector<1x8xf32>
    %54 = arith.divf %52, %53 : vector<1x8xf32>
    %55 = math.sqrt %54 : vector<1x8xf32>
    %56 = vector.broadcast %47 : vector<1x8xf32> to vector<4x8xf32>
    %57 = arith.subf %43, %56 : vector<4x8xf32>
    %cst_17 = arith.constant 9.99999974E-6 : f32
    %58 = vector.broadcast %cst_17 : f32 to vector<1x8xf32>
    %59 = arith.addf %55, %58 : vector<1x8xf32>
    %60 = vector.broadcast %59 : vector<1x8xf32> to vector<4x8xf32>
    %61 = arith.divf %57, %60 : vector<4x8xf32>
    %62 = vector.extract_strided_slice %4 {offsets = [12, 0], sizes = [4, 8], strides = [1, 1]} : vector<16x8xf32> to vector<4x8xf32>
    %cst_18 = arith.constant dense<0.000000e+00> : vector<8xf32>
    %63 = vector.multi_reduction <add>, %62, %cst_18 [0] : vector<4x8xf32> to vector<8xf32>
    %64 = vector.shape_cast %63 : vector<8xf32> to vector<1x8xf32>
    %cst_19 = arith.constant 4.000000e+00 : f32
    %65 = vector.broadcast %cst_19 : f32 to vector<1x8xf32>
    %66 = arith.divf %64, %65 : vector<1x8xf32>
    %67 = vector.broadcast %66 : vector<1x8xf32> to vector<4x8xf32>
    %68 = arith.subf %62, %67 : vector<4x8xf32>
    %69 = arith.mulf %68, %68 : vector<4x8xf32>
    %cst_20 = arith.constant dense<0.000000e+00> : vector<8xf32>
    %70 = vector.multi_reduction <add>, %69, %cst_20 [0] : vector<4x8xf32> to vector<8xf32>
    %71 = vector.shape_cast %70 : vector<8xf32> to vector<1x8xf32>
    %cst_21 = arith.constant 3.000000e+00 : f32
    %72 = vector.broadcast %cst_21 : f32 to vector<1x8xf32>
    %73 = arith.divf %71, %72 : vector<1x8xf32>
    %74 = math.sqrt %73 : vector<1x8xf32>
    %75 = vector.broadcast %66 : vector<1x8xf32> to vector<4x8xf32>
    %76 = arith.subf %62, %75 : vector<4x8xf32>
    %cst_22 = arith.constant 9.99999974E-6 : f32
    %77 = vector.broadcast %cst_22 : f32 to vector<1x8xf32>
    %78 = arith.addf %74, %77 : vector<1x8xf32>
    %79 = vector.broadcast %78 : vector<1x8xf32> to vector<4x8xf32>
    %80 = arith.divf %76, %79 : vector<4x8xf32>
    %81 = tpu.concatenate %23, %42, %61, %80 in 0 : vector<4x8xf32>, vector<4x8xf32>, vector<4x8xf32>, vector<4x8xf32> -> vector<16x8xf32>
    %82 = tpu.concatenate %9, %28, %47, %66 in 0 : vector<1x8xf32>, vector<1x8xf32>, vector<1x8xf32>, vector<1x8xf32> -> vector<4x8xf32>
    %83 = tpu.concatenate %17, %36, %55, %74 in 0 : vector<1x8xf32>, vector<1x8xf32>, vector<1x8xf32>, vector<1x8xf32> -> vector<4x8xf32>
    %cst_23 = arith.constant dense<0.000000e+00> : vector<8xf32>
    %84 = vector.multi_reduction <add>, %4, %cst_23 [0] : vector<16x8xf32> to vector<8xf32>
    %85 = vector.shape_cast %84 : vector<8xf32> to vector<1x8xf32>
    %cst_24 = arith.constant 1.600000e+01 : f32
    %86 = vector.broadcast %cst_24 : f32 to vector<1x8xf32>
    %87 = arith.divf %85, %86 : vector<1x8xf32>
    %88 = vector.extract_strided_slice %81 {offsets = [0, 0], sizes = [16, 4], strides = [1, 1]} : vector<16x8xf32> to vector<16x4xf32>
    %89 = vector.extract_strided_slice %81 {offsets = [0, 4], sizes = [16, 4], strides = [1, 1]} : vector<16x8xf32> to vector<16x4xf32>
    %90 = vector.shape_cast %88 : vector<16x4xf32> to vector<1x16x4xf32>
    %91 = vector.shape_cast %89 : vector<16x4xf32> to vector<1x16x4xf32>
    %92 = tpu.concatenate %90, %91 in 0 : vector<1x16x4xf32>, vector<1x16x4xf32> -> vector<2x16x4xf32>
    %c0_25 = arith.constant 0 : index
    %c0_26 = arith.constant 0 : index
    %c0_27 = arith.constant 0 : index
    %93 = vector.load %arg12[%c0_25, %c0_26, %c0_27] : memref<2x16x4xf32, #tpu.memory_space<vmem>>, vector<2x16x4xf32>
    tpu.vector_store %arg12[%c0_25, %c0_26, %c0_27], %92 {strides = array<i32>} : memref<2x16x4xf32, #tpu.memory_space<vmem>>, vector<2x16x4xf32>,
    %94 = vector.broadcast %87 : vector<1x8xf32> to vector<4x8xf32>
    %95 = arith.subf %82, %94 : vector<4x8xf32>
    %c0_28 = arith.constant 0 : index
    %c0_29 = arith.constant 0 : index
    %96 = vector.load %arg1[%c0_28, %c0_29] : memref<4x512xf32, #tpu.memory_space<vmem>>, vector<4x512xf32>
    %cst_30 = arith.constant dense<0.000000e+00> : vector<8x512xf32>
    %97 = tpu.matmul %95, %96, %cst_30 {dimension_numbers = #tpu.dot_dimension_numbers<[0], [0], [1], [1], [0, 1, 1, 1], [], []>} : vector<4x8xf32>, vector<4x512xf32>, vector<8x512xf32> -> vector<8x512xf32>
    %98 = vector.broadcast %87 : vector<1x8xf32> to vector<16x8xf32>
    %99 = arith.subf %4, %98 : vector<16x8xf32>
    %c0_31 = arith.constant 0 : index
    %c0_32 = arith.constant 0 : index
    %100 = vector.load %arg2[%c0_31, %c0_32] : memref<16x512xf32, #tpu.memory_space<vmem>>, vector<16x512xf32>
    %cst_33 = arith.constant dense<0.000000e+00> : vector<8x512xf32>
    %101 = tpu.matmul %99, %100, %cst_33 {dimension_numbers = #tpu.dot_dimension_numbers<[0], [0], [1], [1], [0, 1, 1, 1], [], []>} : vector<16x8xf32>, vector<16x512xf32>, vector<8x512xf32> -> vector<8x512xf32>
    %102 = tpu.concatenate %97, %101 in 1 : vector<8x512xf32>, vector<8x512xf32> -> vector<8x1024xf32>
    %c0_34 = arith.constant 0 : index
    %c0_35 = arith.constant 0 : index
    %103 = vector.load %arg3[%c0_34, %c0_35] : memref<1x1024xf32, #tpu.memory_space<vmem>>, vector<1x1024xf32>
    %104 = vector.broadcast %103 : vector<1x1024xf32> to vector<8x1024xf32>
    %105 = arith.addf %102, %104 : vector<8x1024xf32>
    %106 = math.tanh %105 : vector<8x1024xf32>
    %c0_36 = arith.constant 0 : index
    %c0_37 = arith.constant 0 : index
    %107 = vector.load %arg4[%c0_36, %c0_37] : memref<1024x2xf32, #tpu.memory_space<vmem>>, vector<1024x2xf32>
    %cst_38 = arith.constant dense<0.000000e+00> : vector<8x2xf32>
    %108 = tpu.matmul %106, %107, %cst_38 {dimension_numbers = #tpu.dot_dimension_numbers<[1], [0], [0], [1], [0, 0, 1, 1], [], []>} : vector<8x1024xf32>, vector<1024x2xf32>, vector<8x2xf32> -> vector<8x2xf32>
    %c0_39 = arith.constant 0 : index
    %c0_40 = arith.constant 0 : index
    %109 = vector.load %arg5[%c0_39, %c0_40] : memref<1x2xf32, #tpu.memory_space<vmem>>, vector<1x2xf32>
    %110 = vector.broadcast %109 : vector<1x2xf32> to vector<8x2xf32>
    %111 = arith.addf %108, %110 : vector<8x2xf32>
    %c0_41 = arith.constant 0 : index
    %c0_42 = arith.constant 0 : index
    %112 = vector.load %arg6[%c0_41, %c0_42] : memref<4x512xf32, #tpu.memory_space<vmem>>, vector<4x512xf32>
    %cst_43 = arith.constant dense<0.000000e+00> : vector<8x512xf32>
    %113 = tpu.matmul %83, %112, %cst_43 {dimension_numbers = #tpu.dot_dimension_numbers<[0], [0], [1], [1], [0, 1, 1, 1], [], []>} : vector<4x8xf32>, vector<4x512xf32>, vector<8x512xf32> -> vector<8x512xf32>
    %c0_44 = arith.constant 0 : index
    %c0_45 = arith.constant 0 : index
    %114 = vector.load %arg7[%c0_44, %c0_45] : memref<16x512xf32, #tpu.memory_space<vmem>>, vector<16x512xf32>
    %cst_46 = arith.constant dense<0.000000e+00> : vector<8x512xf32>
    %115 = tpu.matmul %4, %114, %cst_46 {dimension_numbers = #tpu.dot_dimension_numbers<[0], [0], [1], [1], [0, 1, 1, 1], [], []>} : vector<16x8xf32>, vector<16x512xf32>, vector<8x512xf32> -> vector<8x512xf32>
    %116 = tpu.concatenate %113, %115 in 1 : vector<8x512xf32>, vector<8x512xf32> -> vector<8x1024xf32>
    %c0_47 = arith.constant 0 : index
    %c0_48 = arith.constant 0 : index
    %117 = vector.load %arg8[%c0_47, %c0_48] : memref<1x1024xf32, #tpu.memory_space<vmem>>, vector<1x1024xf32>
    %118 = vector.broadcast %117 : vector<1x1024xf32> to vector<8x1024xf32>
    %119 = arith.addf %116, %118 : vector<8x1024xf32>
    %cst_49 = arith.constant 0.000000e+00 : f32
    %120 = vector.broadcast %cst_49 : f32 to vector<8x1024xf32>
    %121 = arith.maximumf %119, %120 : vector<8x1024xf32>
    %c0_50 = arith.constant 0 : index
    %c0_51 = arith.constant 0 : index
    %122 = vector.load %arg9[%c0_50, %c0_51] : memref<1024x2xf32, #tpu.memory_space<vmem>>, vector<1024x2xf32>
    %cst_52 = arith.constant dense<0.000000e+00> : vector<8x2xf32>
    %123 = tpu.matmul %121, %122, %cst_52 {dimension_numbers = #tpu.dot_dimension_numbers<[1], [0], [0], [1], [0, 0, 1, 1], [], []>} : vector<8x1024xf32>, vector<1024x2xf32>, vector<8x2xf32> -> vector<8x2xf32>
    %c0_53 = arith.constant 0 : index
    %c0_54 = arith.constant 0 : index
    %124 = vector.load %arg10[%c0_53, %c0_54] : memref<1x2xf32, #tpu.memory_space<vmem>>, vector<1x2xf32>
    %125 = vector.broadcast %124 : vector<1x2xf32> to vector<8x2xf32>
    %126 = arith.addf %123, %125 : vector<8x2xf32>
    %cst_55 = arith.constant 0.000000e+00 : f32
    %127 = vector.broadcast %cst_55 : f32 to vector<8x2xf32>
    %128 = arith.maximumf %126, %127 : vector<8x2xf32>
    %c0_56 = arith.constant 0 : index
    %c0_57 = arith.constant 0 : index
    %129 = vector.load %arg11[%c0_56, %c0_57] : memref<2x4xf32, #tpu.memory_space<vmem>>, vector<2x4xf32>
    %130 = vector.extract_strided_slice %129 {offsets = [0, 0], sizes = [1, 4], strides = [1, 1]} : vector<2x4xf32> to vector<1x4xf32>
    %131 = tpu.concatenate %130, %130 in 1 : vector<1x4xf32>, vector<1x4xf32> -> vector<1x8xf32>
    %132 = vector.extract_strided_slice %129 {offsets = [1, 0], sizes = [1, 4], strides = [1, 1]} : vector<2x4xf32> to vector<1x4xf32>
    %133 = tpu.concatenate %132, %132 in 1 : vector<1x4xf32>, vector<1x4xf32> -> vector<1x8xf32>
    %134 = tpu.transpose %111, [1, 0] : vector<8x2xf32> -> vector<2x8xf32>
    %135 = vector.broadcast %131 : vector<1x8xf32> to vector<2x8xf32>
    %136 = arith.mulf %134, %135 : vector<2x8xf32>
    %137 = arith.mulf %87, %133 : vector<1x8xf32>
    %138 = vector.broadcast %137 : vector<1x8xf32> to vector<2x8xf32>
    %139 = arith.addf %136, %138 : vector<2x8xf32>
    %140 = tpu.transpose %128, [1, 0] : vector<8x2xf32> -> vector<2x8xf32>
    %141 = vector.extract_strided_slice %139 {offsets = [0, 0], sizes = [2, 4], strides = [1, 1]} : vector<2x8xf32> to vector<2x4xf32>
    %142 = vector.extract_strided_slice %139 {offsets = [0, 4], sizes = [2, 4], strides = [1, 1]} : vector<2x8xf32> to vector<2x4xf32>
    %143 = vector.shape_cast %141 : vector<2x4xf32> to vector<1x2x4xf32>
    %144 = vector.shape_cast %142 : vector<2x4xf32> to vector<1x2x4xf32>
    %145 = tpu.concatenate %143, %144 in 0 : vector<1x2x4xf32>, vector<1x2x4xf32> -> vector<2x2x4xf32>
    %146 = vector.extract_strided_slice %140 {offsets = [0, 0], sizes = [2, 4], strides = [1, 1]} : vector<2x8xf32> to vector<2x4xf32>
    %147 = vector.extract_strided_slice %140 {offsets = [0, 4], sizes = [2, 4], strides = [1, 1]} : vector<2x8xf32> to vector<2x4xf32>
    %148 = vector.shape_cast %146 : vector<2x4xf32> to vector<1x2x4xf32>
    %149 = vector.shape_cast %147 : vector<2x4xf32> to vector<1x2x4xf32>
    %150 = tpu.concatenate %148, %149 in 0 : vector<1x2x4xf32>, vector<1x2x4xf32> -> vector<2x2x4xf32>
    %151 = tpu.concatenate %145, %150 in 2 : vector<2x2x4xf32>, vector<2x2x4xf32> -> vector<2x2x8xf32>
    %c0_58 = arith.constant 0 : index
    %c0_59 = arith.constant 0 : index
    %c0_60 = arith.constant 0 : index
    %152 = vector.load %arg13[%c0_58, %c0_59, %c0_60] : memref<2x2x8xf32, #tpu.memory_space<vmem>>, vector<2x2x8xf32>
    tpu.vector_store %arg13[%c0_58, %c0_59, %c0_60], %151 {strides = array<i32>} : memref<2x2x8xf32, #tpu.memory_space<vmem>>, vector<2x2x8xf32>,
    return
  }
}

</mosaic_0001>

<llo_original>
// kernel: _lambda_.1
$region0: #{_lambda_.1}
  #allocation0 [shape = 'u32[]', space=smem, size = 0x4, offset = 0x4, fixed_abs, tag = 'smem constant byte address 0x4 - core index']
  #allocation1 [shape = 'u32[144,128]{1,0:T(1,128)}', space=vmem, size = 0x12000, scoped, tag = 'internal scratch']
  %s0 = inlined_call_operand.vmem [shape: f32[2,16,4], index: 0, kind: input, shape index: {}]
  %s1 = inlined_call_operand.hbm [shape: f32[4,512], index: 1, kind: input, shape index: {}]
  %s2 = inlined_call_operand.hbm [shape: f32[16,512], index: 2, kind: input, shape index: {}]
  %s3 = inlined_call_operand.hbm [shape: f32[1,1024], index: 3, kind: input, shape index: {}]
  %s4 = inlined_call_operand.hbm [shape: f32[1024,2], index: 4, kind: input, shape index: {}]
  %s5 = inlined_call_operand.vmem [shape: f32[1,2], index: 5, kind: input, shape index: {}]
  %s6 = inlined_call_operand.hbm [shape: f32[4,512], index: 6, kind: input, shape index: {}]
  %s7 = inlined_call_operand.vmem [shape: f32[16,512], index: 7, kind: input, shape index: {}]
  %s8 = inlined_call_operand.vmem [shape: f32[1,1024], index: 8, kind: input, shape index: {}]
  %s9 = inlined_call_operand.hbm [shape: f32[1024,2], index: 9, kind: input, shape index: {}]
  %s10 = inlined_call_operand.vmem [shape: f32[1,2], index: 10, kind: input, shape index: {}]
  %s11 = inlined_call_operand.vmem [shape: f32[2,4], index: 11, kind: input, shape index: {}]
  %s12 = inlined_call_operand.vmem [shape: f32[2,16,4], index: 12, kind: output, shape index: {0}]
  %s13 = inlined_call_operand.hbm [shape: f32[2,2,8], index: 13, kind: output, shape index: {1}]
  %14 = xla_tuple %s12, %s13
  %s15 = sld [smem:[#allocation0]]
  $region90: #{_lambda_.1} parent=0
    _
  %s17 = ssub.s32 1, %s15
  %s18 = scalar_select 0, %s17, %s15
  $region1: #{_lambda_.1} parent=0
    #allocation2 [shape = 'u8[8192]{0}', space=vmem, size = 0x2000, scoped, tag = 'input window, operand 1, single buffered']
    #allocation3 [shape = 's32[1]{0}', space=sflag, size = 0x4, scoped, tag = 'scoped memory for _lambda_.1']
    #allocation4 [shape = 's32[1]{0}', space=sflag, size = 0x4, scoped, tag = 'scoped memory for _lambda_.1']
    #allocation5 [shape = 'u8[32768]{0}', space=vmem, size = 0x8000, scoped, tag = 'input window, operand 2, single buffered']
    #allocation6 [shape = 's32[1]{0}', space=sflag, size = 0x4, scoped, tag = 'scoped memory for _lambda_.1']
    #allocation7 [shape = 'u8[4096]{0}', space=vmem, size = 0x1000, scoped, tag = 'input window, operand 3, single buffered']
    #allocation8 [shape = 'u8[524288]{0}', space=vmem, size = 0x80000, scoped, tag = 'input window, operand 4, single buffered']
    #allocation9 [shape = 's32[1]{0}', space=sflag, size = 0x4, scoped, tag = 'scoped memory for _lambda_.1']
    #allocation10 [shape = 'u8[8192]{0}', space=vmem, size = 0x2000, scoped, tag = 'input window, operand 6, single buffered']
    #allocation11 [shape = 'u8[524288]{0}', space=vmem, size = 0x80000, scoped, tag = 'input window, operand 9, single buffered']
    #allocation12 [shape = 's32[1]{0}', space=sflag, size = 0x4, scoped, tag = 'scoped memory for _lambda_.1']
    #allocation13 [shape = 'u8[2048]{0}', space=vmem, size = 0x800, scoped, tag = 'output window, operand 1, single buffered']
    %19 = vsyncpa [#allocation3], 0
    %20 = vsyncpa [#allocation6], 0
    %21 = vsyncpa [#allocation9], 0
    %22 = vsyncpa [#allocation12], 0
    %23 = vsyncpa [#allocation4], 0
    // Predicated region
    $region2: #{_lambda_.1} parent=1 // pred_check
      _
    $region3: #{_lambda_.1} parent=1 // pred_check_branch
      %25 = sbr.rel (0) target = $region5
    $region4: #{_lambda_.1} parent=1 // pred_region
      _
    $region5: #{_lambda_.1} parent=1 // pred_fallthru
      _
    // Predicated region
    $region6: #{_lambda_.1} parent=1 // pred_check
      _
    $region7: #{_lambda_.1} parent=1 // pred_check_branch
      %27 = sbr.rel (0) target = $region9
    $region8: #{_lambda_.1} parent=1 // pred_region
      %s29 = ssub.s32 256, 256
      %30 = vsyncadd [#allocation3], %s29
      %s32 = sshll.u32 [#allocation2], 4
      %s33 = int_to_ptr.vmem [resolvable:$true] %s32
      %35 = dma.hbm_to_vmem [thread:$0]  %s1, 256, %s33, [#allocation3]
    $region9: #{_lambda_.1} parent=1 // pred_fallthru
      _
    // Predicated region
    $region10: #{_lambda_.1} parent=1 // pred_check
      _
    $region11: #{_lambda_.1} parent=1 // pred_check_branch
      %37 = sbr.rel (0) target = $region13
    $region12: #{_lambda_.1} parent=1 // pred_region
      %s39 = ssub.s32 1024, 1024
      %40 = vsyncadd [#allocation6], %s39
      %s41 = sshll.u32 [#allocation5], 4
      %s42 = int_to_ptr.vmem [resolvable:$true] %s41
      %47 = dma.hbm_to_vmem [thread:$0]  %s2, 1024, %s42, [#allocation6], 512, 512, 32
    $region13: #{_lambda_.1} parent=1 // pred_fallthru
      _
    // Predicated region
    $region14: #{_lambda_.1} parent=1 // pred_check
      _
    $region15: #{_lambda_.1} parent=1 // pred_check_branch
      %49 = sbr.rel (0) target = $region17
    $region16: #{_lambda_.1} parent=1 // pred_region
      %s51 = ssub.s32 128, 128
      %52 = vsyncadd [#allocation6], %s51
      %s54 = sshll.u32 [#allocation7], 4
      %s55 = int_to_ptr.vmem [resolvable:$true] %s54
      %57 = dma.hbm_to_vmem [thread:$0]  %s3, 128, %s55, [#allocation6]
    $region17: #{_lambda_.1} parent=1 // pred_fallthru
      _
    // Predicated region
    $region18: #{_lambda_.1} parent=1 // pred_check
      _
    $region19: #{_lambda_.1} parent=1 // pred_check_branch
      %59 = sbr.rel (0) target = $region21
    $region20: #{_lambda_.1} parent=1 // pred_region
      %s61 = ssub.s32 16384, 16384
      %62 = vsyncadd [#allocation9], %s61
      %s63 = sshll.u32 [#allocation8], 4
      %s64 = int_to_ptr.vmem [resolvable:$true] %s63
      %69 = dma.hbm_to_vmem [thread:$0]  %s4, 16384, %s64, [#allocation9], 128, 128, 8
    $region21: #{_lambda_.1} parent=1 // pred_fallthru
      _
    // Predicated region
    $region22: #{_lambda_.1} parent=1 // pred_check
      _
    $region23: #{_lambda_.1} parent=1 // pred_check_branch
      %71 = sbr.rel (0) target = $region25
    $region24: #{_lambda_.1} parent=1 // pred_region
      _
    $region25: #{_lambda_.1} parent=1 // pred_fallthru
      _
    // Predicated region
    $region26: #{_lambda_.1} parent=1 // pred_check
      _
    $region27: #{_lambda_.1} parent=1 // pred_check_branch
      %73 = sbr.rel (0) target = $region29
    $region28: #{_lambda_.1} parent=1 // pred_region
      %s75 = ssub.s32 256, 256
      %76 = vsyncadd [#allocation9], %s75
      %s78 = sshll.u32 [#allocation10], 4
      %s79 = int_to_ptr.vmem [resolvable:$true] %s78
      %81 = dma.hbm_to_vmem [thread:$0]  %s6, 256, %s79, [#allocation9]
    $region29: #{_lambda_.1} parent=1 // pred_fallthru
      _
    // Predicated region
    $region30: #{_lambda_.1} parent=1 // pred_check
      _
    $region31: #{_lambda_.1} parent=1 // pred_check_branch
      %83 = sbr.rel (0) target = $region33
    $region32: #{_lambda_.1} parent=1 // pred_region
      _
    $region33: #{_lambda_.1} parent=1 // pred_fallthru
      _
    // Predicated region
    $region34: #{_lambda_.1} parent=1 // pred_check
      _
    $region35: #{_lambda_.1} parent=1 // pred_check_branch
      %85 = sbr.rel (0) target = $region37
    $region36: #{_lambda_.1} parent=1 // pred_region
      _
    $region37: #{_lambda_.1} parent=1 // pred_fallthru
      _
    // Predicated region
    $region38: #{_lambda_.1} parent=1 // pred_check
      _
    $region39: #{_lambda_.1} parent=1 // pred_check_branch
      %87 = sbr.rel (0) target = $region41
    $region40: #{_lambda_.1} parent=1 // pred_region
      %s89 = ssub.s32 16384, 16384
      %90 = vsyncadd [#allocation12], %s89
      %s91 = sshll.u32 [#allocation11], 4
      %s92 = int_to_ptr.vmem [resolvable:$true] %s91
      %97 = dma.hbm_to_vmem [thread:$0]  %s9, 16384, %s92, [#allocation12], 128, 128, 8
    $region41: #{_lambda_.1} parent=1 // pred_fallthru
      _
    // Predicated region
    $region42: #{_lambda_.1} parent=1 // pred_check
      _
    $region43: #{_lambda_.1} parent=1 // pred_check_branch
      %99 = sbr.rel (0) target = $region45
    $region44: #{_lambda_.1} parent=1 // pred_region
      _
    $region45: #{_lambda_.1} parent=1 // pred_fallthru
      _
    // Predicated region
    $region46: #{_lambda_.1} parent=1 // pred_check
      _
    $region47: #{_lambda_.1} parent=1 // pred_check_branch
      %101 = sbr.rel (0) target = $region49
    $region48: #{_lambda_.1} parent=1 // pred_region
      _
    $region49: #{_lambda_.1} parent=1 // pred_fallthru
      _
    // Predicated region
    $region50: #{_lambda_.1} parent=1 // pred_check
      _
    $region51: #{_lambda_.1} parent=1 // pred_check_branch
      %103 = sbr.rel (0) target = $region53
    $region52: #{_lambda_.1} parent=1 // pred_region
      %104 = dma.done [#allocation3], 256
    $region53: #{_lambda_.1} parent=1 // pred_fallthru
      _
    // Predicated region
    $region54: #{_lambda_.1} parent=1 // pred_check
      _
    $region55: #{_lambda_.1} parent=1 // pred_check_branch
      %106 = sbr.rel (0) target = $region57
    $region56: #{_lambda_.1} parent=1 // pred_region
      %107 = dma.done [#allocation6], 1024
    $region57: #{_lambda_.1} parent=1 // pred_fallthru
      _
    // Predicated region
    $region58: #{_lambda_.1} parent=1 // pred_check
      _
    $region59: #{_lambda_.1} parent=1 // pred_check_branch
      %109 = sbr.rel (0) target = $region61
    $region60: #{_lambda_.1} parent=1 // pred_region
      %110 = dma.done [#allocation6], 128
    $region61: #{_lambda_.1} parent=1 // pred_fallthru
      _
    // Predicated region
    $region62: #{_lambda_.1} parent=1 // pred_check
      _
    $region63: #{_lambda_.1} parent=1 // pred_check_branch
      %112 = sbr.rel (0) target = $region65
    $region64: #{_lambda_.1} parent=1 // pred_region
      %113 = dma.done [#allocation9], 16384
    $region65: #{_lambda_.1} parent=1 // pred_fallthru
      _
    // Predicated region
    $region66: #{_lambda_.1} parent=1 // pred_check
      _
    $region67: #{_lambda_.1} parent=1 // pred_check_branch
      %115 = sbr.rel (0) target = $region69
    $region68: #{_lambda_.1} parent=1 // pred_region
      %116 = dma.done [#allocation9], 256
    $region69: #{_lambda_.1} parent=1 // pred_fallthru
      _
    // Predicated region
    $region70: #{_lambda_.1} parent=1 // pred_check
      _
    $region71: #{_lambda_.1} parent=1 // pred_check_branch
      %118 = sbr.rel (0) target = $region73
    $region72: #{_lambda_.1} parent=1 // pred_region
      %119 = dma.done [#allocation12], 16384
    $region73: #{_lambda_.1} parent=1 // pred_fallthru
      _
    %v120 = vld [vmem:[%s0] sm:$0xff]
    %v121 = vld [vmem:[%s0 + $0x8] sm:$0xff]
    %s122 = scalar_lea.vmem %s0, 16
    %v123 = vld [vmem:[%s122] sm:$0xff]
    %v124 = vld [vmem:[%s122 + $0x8] sm:$0xff]
    %127 = vrot.lane.b32.xlu0 %v123, 4
    %v128 = vpop.permute.xlu0 %127
    %129 = vrot.lane.b32.xlu0 %v124, 4
    %v130 = vpop.permute.xlu0 %129
    %vm133 = vcmask 31744
    %v134 = vsel %vm133, %v120, %v128
    %v135 = vsel %vm133, %v121, %v130
    %vm136 = vcmask 60416
    %v137 = vsel %vm136, %v134, 0.0
    %v138 = vrot.slane %v137, 4
    %v139 = vadd.f32 %v137, %v138
    %v140 = vrot.slane %v139, 2
    %v141 = vadd.f32 %v139, %v140
    %v142 = vrot.slane %v141, 1
    %v143 = vadd.f32 %v141, %v142
    %v144 = vrcp.pop 4.0
    %v145 = vmul.f32 %v143, %v144
    %v146 = vsub.f32 %v134, %v145
    %v147 = vmul.f32 %v146, %v146
    %v148 = vsel %vm136, %v147, 0.0
    %v149 = vrot.slane %v148, 4
    %v150 = vadd.f32 %v148, %v149
    %v151 = vrot.slane %v150, 2
    %v152 = vadd.f32 %v150, %v151
    %v153 = vrot.slane %v152, 1
    %v154 = vadd.f32 %v152, %v153
    %v155 = vrcp.pop 3.0
    %v156 = vmul.f32 %v154, %v155
    %v157 = vrsqrt.pop %v156
    %v158 = vmul.f32 %v156, %v157
    %vm159 = vcmp.eq.f32.partialorder %v156, inf
    %v160 = vsel %vm159, %v156, %v158
    %vm161 = vcmp.eq.f32.partialorder %v156, 0.0
    %v162 = vand.u32 %v156, 2147483648
    %v163 = vsel %vm161, %v162, %v160
    %v164 = vadd.f32 %v163, 1e-05
    %v165 = vrcp.pop %v164
    %v166 = vmul.f32 %v146, %v165
    %v168 = vrot.slane %v134, 4
    %v170 = vsel %vm136, %v168, 0.0
    %v171 = vrot.slane %v170, 4
    %v172 = vadd.f32 %v170, %v171
    %v173 = vrot.slane %v172, 2
    %v174 = vadd.f32 %v172, %v173
    %v175 = vrot.slane %v174, 1
    %v176 = vadd.f32 %v174, %v175
    %v177 = vmul.f32 %v176, %v144
    %v178 = vsub.f32 %v134, %v177
    %v179 = vmul.f32 %v178, %v178
    %v181 = vrot.slane %v179, 4
    %v183 = vsel %vm136, %v181, 0.0
    %v184 = vrot.slane %v183, 4
    %v185 = vadd.f32 %v183, %v184
    %v186 = vrot.slane %v185, 2
    %v187 = vadd.f32 %v185, %v186
    %v188 = vrot.slane %v187, 1
    %v189 = vadd.f32 %v187, %v188
    %v190 = vmul.f32 %v189, %v155
    %v191 = vrsqrt.pop %v190
    %v192 = vmul.f32 %v190, %v191
    %vm193 = vcmp.eq.f32.partialorder %v190, inf
    %v194 = vsel %vm193, %v190, %v192
    %vm195 = vcmp.eq.f32.partialorder %v190, 0.0
    %v196 = vand.u32 %v190, 2147483648
    %v197 = vsel %vm195, %v196, %v194
    %v198 = vadd.f32 %v197, 1e-05
    %v199 = vrcp.pop %v198
    %v200 = vmul.f32 %v178, %v199
    %v201 = vsel %vm136, %v135, 0.0
    %v202 = vrot.slane %v201, 4
    %v203 = vadd.f32 %v201, %v202
    %v204 = vrot.slane %v203, 2
    %v205 = vadd.f32 %v203, %v204
    %v206 = vrot.slane %v205, 1
    %v207 = vadd.f32 %v205, %v206
    %v208 = vmul.f32 %v207, %v144
    %v209 = vsub.f32 %v135, %v208
    %v210 = vmul.f32 %v209, %v209
    %v211 = vsel %vm136, %v210, 0.0
    %v212 = vrot.slane %v211, 4
    %v213 = vadd.f32 %v211, %v212
    %v214 = vrot.slane %v213, 2
    %v215 = vadd.f32 %v213, %v214
    %v216 = vrot.slane %v215, 1
    %v217 = vadd.f32 %v215, %v216
    %v218 = vmul.f32 %v217, %v155
    %v219 = vrsqrt.pop %v218
    %v220 = vmul.f32 %v218, %v219
    %vm221 = vcmp.eq.f32.partialorder %v218, inf
    %v222 = vsel %vm221, %v218, %v220
    %vm223 = vcmp.eq.f32.partialorder %v218, 0.0
    %v224 = vand.u32 %v218, 2147483648
    %v225 = vsel %vm223, %v224, %v222
    %v226 = vadd.f32 %v225, 1e-05
    %v227 = vrcp.pop %v226
    %v228 = vmul.f32 %v209, %v227
    %v230 = vrot.slane %v135, 4
    %v232 = vsel %vm136, %v230, 0.0
    %v233 = vrot.slane %v232, 4
    %v234 = vadd.f32 %v232, %v233
    %v235 = vrot.slane %v234, 2
    %v236 = vadd.f32 %v234, %v235
    %v237 = vrot.slane %v236, 1
    %v238 = vadd.f32 %v236, %v237
    %v239 = vmul.f32 %v238, %v144
    %v240 = vsub.f32 %v135, %v239
    %v241 = vmul.f32 %v240, %v240
    %v243 = vrot.slane %v241, 4
    %v245 = vsel %vm136, %v243, 0.0
    %v246 = vrot.slane %v245, 4
    %v247 = vadd.f32 %v245, %v246
    %v248 = vrot.slane %v247, 2
    %v249 = vadd.f32 %v247, %v248
    %v250 = vrot.slane %v249, 1
    %v251 = vadd.f32 %v249, %v250
    %v252 = vmul.f32 %v251, %v155
    %v253 = vrsqrt.pop %v252
    %v254 = vmul.f32 %v252, %v253
    %vm255 = vcmp.eq.f32.partialorder %v252, inf
    %v256 = vsel %vm255, %v252, %v254
    %vm257 = vcmp.eq.f32.partialorder %v252, 0.0
    %v258 = vand.u32 %v252, 2147483648
    %v259 = vsel %vm257, %v258, %v256
    %v260 = vadd.f32 %v259, 1e-05
    %v261 = vrcp.pop %v260
    %v262 = vmul.f32 %v240, %v261
    %vm263 = vcmask 1043456
    %v264 = vsel %vm263, %v166, %v200
    %v265 = vsel %vm263, %v228, %v262
    %vm266 = vcmask 1040384
    %v267 = vsel %vm266, %v145, %v177
    %vm268 = vcmask 1041408
    %v269 = vsel %vm268, %v267, %v208
    %vm270 = vcmask 1042432
    %v271 = vsel %vm270, %v269, %v239
    %v272 = vsel %vm266, %v163, %v197
    %v273 = vsel %vm268, %v272, %v225
    %v274 = vsel %vm270, %v273, %v259
    %vm275 = vcmask 64512
    %v276 = vsel %vm275, %v134, 0.0
    %v277 = vsel %vm275, %v135, 0.0
    %v278 = vadd.f32 %v276, %v277
    %v279 = vrot.slane %v278, 4
    %v280 = vadd.f32 %v278, %v279
    %v281 = vrot.slane %v280, 2
    %v282 = vadd.f32 %v280, %v281
    %v283 = vrot.slane %v282, 1
    %v284 = vadd.f32 %v282, %v283
    %v285 = vrcp.pop 16.0
    %v286 = vmul.f32 %v284, %v285
    %289 = vrot.lane.b32.xlu0 %v264, 124
    %v290 = vpop.permute.xlu0 %289
    %291 = vrot.lane.b32.xlu0 %v265, 124
    %v292 = vpop.permute.xlu0 %291
    %295 = vst.msk [vmem:[%s12] sm:$0xff] %vm133, %v264
    %296 = vst.msk [vmem:[%s12 + $0x8] sm:$0xff] %vm133, %v265
    %297 = vst.msk [vmem:[%s12 + $0x10] sm:$0xff] %vm133, %v290
    %298 = vst.msk [vmem:[%s12 + $0x18] sm:$0xff] %vm133, %v292
    %v299 = vsub.f32 %v271, %v286
    %v300 = vld [vmem:[#allocation2] sm:$0xff]
    %v301 = vld [vmem:[#allocation2 + $0x8] sm:$0xff]
    %302 = vxpose.xlu0.b32.start [1/16] %v299, 128
    %303 = vxpose.xlu0.b32.cont [2/16] 0.0, 128
    %304 = vxpose.xlu0.b32.cont [3/16] 0.0, 128
    %305 = vxpose.xlu0.b32.cont [4/16] 0.0, 128
    %306 = vxpose.xlu0.b32.cont [5/16] 0.0, 128
    %307 = vxpose.xlu0.b32.cont [6/16] 0.0, 128
    %308 = vxpose.xlu0.b32.cont [7/16] 0.0, 128
    %309 = vxpose.xlu0.b32.cont [8/16] 0.0, 128
    %310 = vxpose.xlu0.b32.cont [9/16] 0.0, 128
    %311 = vxpose.xlu0.b32.cont [10/16] 0.0, 128
    %312 = vxpose.xlu0.b32.cont [11/16] 0.0, 128
    %313 = vxpose.xlu0.b32.cont [12/16] 0.0, 128
    %314 = vxpose.xlu0.b32.cont [13/16] 0.0, 128
    %315 = vxpose.xlu0.b32.cont [14/16] 0.0, 128
    %316 = vxpose.xlu0.b32.cont [15/16] 0.0, 128
    %317 = vxpose.xlu0.b32.end [16/16] 0.0, 128
    %v318 = vpop.trf.xlu0
    %v319 = vpop.trf.xlu0
    %v320 = vpop.trf.xlu0
    %v321 = vpop.trf.xlu0
    %v322 = vpop.trf.xlu0
    %v323 = vpop.trf.xlu0
    %v324 = vpop.trf.xlu0
    %v325 = vpop.trf.xlu0
    %v326 = vpop.trf.xlu0
    %v327 = vpop.trf.xlu0
    %v328 = vpop.trf.xlu0
    %v329 = vpop.trf.xlu0
    %v330 = vpop.trf.xlu0
    %v331 = vpop.trf.xlu0
    %v332 = vpop.trf.xlu0
    %v333 = vpop.trf.xlu0
    %v336 = vcombine.high %v300, %v300
    %v337 = vcombine.high %v301, %v301
    %v339 = vsel %vm133, %v318, 0
    %v341 = vsel %vm263, %v300, 0
    %v343 = vsel %vm263, %v336, 0
    %v345 = vsel %vm263, %v301, 0
    %v347 = vsel %vm263, %v337, 0
    %349 = vmatprep.subr.mxu0 %v343
    %350 = vmatpush1.msra.mxu0 %v341
    %351 = vmatprep.subr.mxu0 0.0
    %352 = vmatpush1.msra.mxu0 0.0
    %353 = vmatprep.subr.mxu0 0.0
    %354 = vmatpush1.msra.mxu0 0.0
    %355 = vmatprep.subr.mxu0 0.0
    %356 = vmatpush1.msra.mxu0 0.0
    %357 = vmatprep.subr.mxu0 0.0
    %358 = vmatpush1.msra.mxu0 0.0
    %359 = vmatprep.subr.mxu0 0.0
    %360 = vmatpush1.msra.mxu0 0.0
    %361 = vmatprep.subr.mxu0 0.0
    %362 = vmatpush1.msra.mxu0 0.0
    %363 = vmatprep.subr.mxu0 0.0
    %364 = vmatpush1.msra.mxu0 0.0
    %365 = vmatprep.subr.mxu0 0.0
    %366 = vmatpush1.msra.mxu0 0.0
    %367 = vmatprep.subr.mxu0 0.0
    %368 = vmatpush1.msra.mxu0 0.0
    %369 = vmatprep.subr.mxu0 0.0
    %370 = vmatpush1.msra.mxu0 0.0
    %371 = vmatprep.subr.mxu0 0.0
    %372 = vmatpush1.msra.mxu0 0.0
    %373 = vmatprep.subr.mxu0 0.0
    %374 = vmatpush1.msra.mxu0 0.0
    %375 = vmatprep.subr.mxu0 0.0
    %376 = vmatpush1.msra.mxu0 0.0
    %377 = vmatprep.subr.mxu0 0.0
    %378 = vmatpush1.msra.mxu0 0.0
    %379 = vmatprep.subr.mxu0 0.0
    %380 = vmatpush1.msra.mxu0 0.0
    %381 = vmatprep.subr.mxu0 0.0
    %382 = vmatpush1.msra.mxu0 0.0
    %383 = vmatprep.subr.mxu0 0.0
    %384 = vmatpush1.msra.mxu0 0.0
    %385 = vmatprep.subr.mxu0 0.0
    %386 = vmatpush1.msra.mxu0 0.0
    %387 = vmatprep.subr.mxu0 0.0
    %388 = vmatpush1.msra.mxu0 0.0
    %389 = vmatprep.subr.mxu0 0.0
    %390 = vmatpush1.msra.mxu0 0.0
    %391 = vmatprep.subr.mxu0 0.0
    %392 = vmatpush1.msra.mxu0 0.0
    %393 = vmatprep.subr.mxu0 0.0
    %394 = vmatpush1.msra.mxu0 0.0
    %395 = vmatprep.subr.mxu0 0.0
    %396 = vmatpush1.msra.mxu0 0.0
    %397 = vmatprep.subr.mxu0 0.0
    %398 = vmatpush1.msra.mxu0 0.0
    %399 = vmatprep.subr.mxu0 0.0
    %400 = vmatpush1.msra.mxu0 0.0
    %401 = vmatprep.subr.mxu0 0.0
    %402 = vmatpush1.msra.mxu0 0.0
    %403 = vmatprep.subr.mxu0 0.0
    %404 = vmatpush1.msra.mxu0 0.0
    %405 = vmatprep.subr.mxu0 0.0
    %406 = vmatpush1.msra.mxu0 0.0
    %407 = vmatprep.subr.mxu0 0.0
    %408 = vmatpush1.msra.mxu0 0.0
    %409 = vmatprep.subr.mxu0 0.0
    %410 = vmatpush1.msra.mxu0 0.0
    %411 = vmatprep.subr.mxu0 0.0
    %412 = vmatpush1.msra.mxu0 0.0
    %413 = vmatprep.mubr.f32.mxu0 0.0
    %414 = vmatmul.mubr.f32.gmra.mrb[0].mxu0 %v339
    %v415 = vpop.f32.mrb[0].mxu0
    %v416 = vadd.f32 0.0, %v415
    %v417 = vpop.f32.mrb[0].mxu0
    %v418 = vadd.f32 0.0, %v417
    %419 = vdwg.mxu0
    %420 = vmatprep.subr.mxu0 %v347
    %421 = vmatpush1.msra.mxu0 %v345
    %422 = vmatprep.subr.mxu0 0.0
    %423 = vmatpush1.msra.mxu0 0.0
    %424 = vmatprep.subr.mxu0 0.0
    %425 = vmatpush1.msra.mxu0 0.0
    %426 = vmatprep.subr.mxu0 0.0
    %427 = vmatpush1.msra.mxu0 0.0
    %428 = vmatprep.subr.mxu0 0.0
    %429 = vmatpush1.msra.mxu0 0.0
    %430 = vmatprep.subr.mxu0 0.0
    %431 = vmatpush1.msra.mxu0 0.0
    %432 = vmatprep.subr.mxu0 0.0
    %433 = vmatpush1.msra.mxu0 0.0
    %434 = vmatprep.subr.mxu0 0.0
    %435 = vmatpush1.msra.mxu0 0.0
    %436 = vmatprep.subr.mxu0 0.0
    %437 = vmatpush1.msra.mxu0 0.0
    %438 = vmatprep.subr.mxu0 0.0
    %439 = vmatpush1.msra.mxu0 0.0
    %440 = vmatprep.subr.mxu0 0.0
    %441 = vmatpush1.msra.mxu0 0.0
    %442 = vmatprep.subr.mxu0 0.0
    %443 = vmatpush1.msra.mxu0 0.0
    %444 = vmatprep.subr.mxu0 0.0
    %445 = vmatpush1.msra.mxu0 0.0
    %446 = vmatprep.subr.mxu0 0.0
    %447 = vmatpush1.msra.mxu0 0.0
    %448 = vmatprep.subr.mxu0 0.0
    %449 = vmatpush1.msra.mxu0 0.0
    %450 = vmatprep.subr.mxu0 0.0
    %451 = vmatpush1.msra.mxu0 0.0
    %452 = vmatprep.subr.mxu0 0.0
    %453 = vmatpush1.msra.mxu0 0.0
    %454 = vmatprep.subr.mxu0 0.0
    %455 = vmatpush1.msra.mxu0 0.0
    %456 = vmatprep.subr.mxu0 0.0
    %457 = vmatpush1.msra.mxu0 0.0
    %458 = vmatprep.subr.mxu0 0.0
    %459 = vmatpush1.msra.mxu0 0.0
    %460 = vmatprep.subr.mxu0 0.0
    %461 = vmatpush1.msra.mxu0 0.0
    %462 = vmatprep.subr.mxu0 0.0
    %463 = vmatpush1.msra.mxu0 0.0
    %464 = vmatprep.subr.mxu0 0.0
    %465 = vmatpush1.msra.mxu0 0.0
    %466 = vmatprep.subr.mxu0 0.0
    %467 = vmatpush1.msra.mxu0 0.0
    %468 = vmatprep.subr.mxu0 0.0
    %469 = vmatpush1.msra.mxu0 0.0
    %470 = vmatprep.subr.mxu0 0.0
    %471 = vmatpush1.msra.mxu0 0.0
    %472 = vmatprep.subr.mxu0 0.0
    %473 = vmatpush1.msra.mxu0 0.0
    %474 = vmatprep.subr.mxu0 0.0
    %475 = vmatpush1.msra.mxu0 0.0
    %476 = vmatprep.subr.mxu0 0.0
    %477 = vmatpush1.msra.mxu0 0.0
    %478 = vmatprep.subr.mxu0 0.0
    %479 = vmatpush1.msra.mxu0 0.0
    %480 = vmatprep.subr.mxu0 0.0
    %481 = vmatpush1.msra.mxu0 0.0
    %482 = vmatprep.subr.mxu0 0.0
    %483 = vmatpush1.msra.mxu0 0.0
    %484 = vmatprep.mubr.f32.mxu0 0.0
    %485 = vmatmul.mubr.f32.gmra.mrb[0].mxu0 %v339
    %v486 = vpop.f32.mrb[0].mxu0
    %v487 = vadd.f32 0.0, %v486
    %v488 = vpop.f32.mrb[0].mxu0
    %v489 = vadd.f32 0.0, %v488
    %490 = vdwg.mxu0
    %v491 = vsub.f32 %v134, %v286
    %v492 = vsub.f32 %v135, %v286
    %v493 = vld [vmem:[#allocation5] sm:$0xff]
    %v494 = vld [vmem:[#allocation5 + $0x8] sm:$0xff]
    %v495 = vld [vmem:[#allocation5 + $0x10] sm:$0xff]
    %v496 = vld [vmem:[#allocation5 + $0x18] sm:$0xff]
    %v497 = vld [vmem:[#allocation5 + $0x20] sm:$0xff]
    %v498 = vld [vmem:[#allocation5 + $0x28] sm:$0xff]
    %v499 = vld [vmem:[#allocation5 + $0x30] sm:$0xff]
    %v500 = vld [vmem:[#allocation5 + $0x38] sm:$0xff]
    %501 = vxpose.xlu0.b32.start [1/16] %v491, 128
    %502 = vxpose.xlu0.b32.cont [2/16] %v492, 128
    %503 = vxpose.xlu0.b32.cont [3/16] 0.0, 128
    %504 = vxpose.xlu0.b32.cont [4/16] 0.0, 128
    %505 = vxpose.xlu0.b32.cont [5/16] 0.0, 128
    %506 = vxpose.xlu0.b32.cont [6/16] 0.0, 128
    %507 = vxpose.xlu0.b32.cont [7/16] 0.0, 128
    %508 = vxpose.xlu0.b32.cont [8/16] 0.0, 128
    %509 = vxpose.xlu0.b32.cont [9/16] 0.0, 128
    %510 = vxpose.xlu0.b32.cont [10/16] 0.0, 128
    %511 = vxpose.xlu0.b32.cont [11/16] 0.0, 128
    %512 = vxpose.xlu0.b32.cont [12/16] 0.0, 128
    %513 = vxpose.xlu0.b32.cont [13/16] 0.0, 128
    %514 = vxpose.xlu0.b32.cont [14/16] 0.0, 128
    %515 = vxpose.xlu0.b32.cont [15/16] 0.0, 128
    %516 = vxpose.xlu0.b32.end [16/16] 0.0, 128
    %v517 = vpop.trf.xlu0
    %v518 = vpop.trf.xlu0
    %v519 = vpop.trf.xlu0
    %v520 = vpop.trf.xlu0
    %v521 = vpop.trf.xlu0
    %v522 = vpop.trf.xlu0
    %v523 = vpop.trf.xlu0
    %v524 = vpop.trf.xlu0
    %v525 = vpop.trf.xlu0
    %v526 = vpop.trf.xlu0
    %v527 = vpop.trf.xlu0
    %v528 = vpop.trf.xlu0
    %v529 = vpop.trf.xlu0
    %v530 = vpop.trf.xlu0
    %v531 = vpop.trf.xlu0
    %v532 = vpop.trf.xlu0
    %vm533 = vcmask 130048
    %v535 = vsel %vm533, %v517, 0
    %537 = vmatprep.subr.mxu0 %v494
    %538 = vmatpush1.msra.mxu0 %v493
    %539 = vmatprep.subr.mxu0 %v498
    %540 = vmatpush1.msra.mxu0 %v497
    %541 = vmatprep.subr.mxu0 0.0
    %542 = vmatpush1.msra.mxu0 0.0
    %543 = vmatprep.subr.mxu0 0.0
    %544 = vmatpush1.msra.mxu0 0.0
    %545 = vmatprep.subr.mxu0 0.0
    %546 = vmatpush1.msra.mxu0 0.0
    %547 = vmatprep.subr.mxu0 0.0
    %548 = vmatpush1.msra.mxu0 0.0
    %549 = vmatprep.subr.mxu0 0.0
    %550 = vmatpush1.msra.mxu0 0.0
    %551 = vmatprep.subr.mxu0 0.0
    %552 = vmatpush1.msra.mxu0 0.0
    %553 = vmatprep.subr.mxu0 0.0
    %554 = vmatpush1.msra.mxu0 0.0
    %555 = vmatprep.subr.mxu0 0.0
    %556 = vmatpush1.msra.mxu0 0.0
    %557 = vmatprep.subr.mxu0 0.0
    %558 = vmatpush1.msra.mxu0 0.0
    %559 = vmatprep.subr.mxu0 0.0
    %560 = vmatpush1.msra.mxu0 0.0
    %561 = vmatprep.subr.mxu0 0.0
    %562 = vmatpush1.msra.mxu0 0.0
    %563 = vmatprep.subr.mxu0 0.0
    %564 = vmatpush1.msra.mxu0 0.0
    %565 = vmatprep.subr.mxu0 0.0
    %566 = vmatpush1.msra.mxu0 0.0
    %567 = vmatprep.subr.mxu0 0.0
    %568 = vmatpush1.msra.mxu0 0.0
    %569 = vmatprep.subr.mxu0 0.0
    %570 = vmatpush1.msra.mxu0 0.0
    %571 = vmatprep.subr.mxu0 0.0
    %572 = vmatpush1.msra.mxu0 0.0
    %573 = vmatprep.subr.mxu0 0.0
    %574 = vmatpush1.msra.mxu0 0.0
    %575 = vmatprep.subr.mxu0 0.0
    %576 = vmatpush1.msra.mxu0 0.0
    %577 = vmatprep.subr.mxu0 0.0
    %578 = vmatpush1.msra.mxu0 0.0
    %579 = vmatprep.subr.mxu0 0.0
    %580 = vmatpush1.msra.mxu0 0.0
    %581 = vmatprep.subr.mxu0 0.0
    %582 = vmatpush1.msra.mxu0 0.0
    %583 = vmatprep.subr.mxu0 0.0
    %584 = vmatpush1.msra.mxu0 0.0
    %585 = vmatprep.subr.mxu0 0.0
    %586 = vmatpush1.msra.mxu0 0.0
    %587 = vmatprep.subr.mxu0 0.0
    %588 = vmatpush1.msra.mxu0 0.0
    %589 = vmatprep.subr.mxu0 0.0
    %590 = vmatpush1.msra.mxu0 0.0
    %591 = vmatprep.subr.mxu0 0.0
    %592 = vmatpush1.msra.mxu0 0.0
    %593 = vmatprep.subr.mxu0 0.0
    %594 = vmatpush1.msra.mxu0 0.0
    %595 = vmatprep.subr.mxu0 0.0
    %596 = vmatpush1.msra.mxu0 0.0
    %597 = vmatprep.subr.mxu0 0.0
    %598 = vmatpush1.msra.mxu0 0.0
    %599 = vmatprep.subr.mxu0 0.0
    %600 = vmatpush1.msra.mxu0 0.0
    %601 = vmatprep.mubr.f32.mxu0 0.0
    %602 = vmatmul.mubr.f32.gmra.mrb[0].mxu0 %v535
    %v603 = vpop.f32.mrb[0].mxu0
    %v604 = vadd.f32 0.0, %v603
    %v605 = vpop.f32.mrb[0].mxu0
    %v606 = vadd.f32 0.0, %v605
    %607 = vdwg.mxu0
    %608 = vmatprep.subr.mxu0 %v496
    %609 = vmatpush1.msra.mxu0 %v495
    %610 = vmatprep.subr.mxu0 %v500
    %611 = vmatpush1.msra.mxu0 %v499
    %612 = vmatprep.subr.mxu0 0.0
    %613 = vmatpush1.msra.mxu0 0.0
    %614 = vmatprep.subr.mxu0 0.0
    %615 = vmatpush1.msra.mxu0 0.0
    %616 = vmatprep.subr.mxu0 0.0
    %617 = vmatpush1.msra.mxu0 0.0
    %618 = vmatprep.subr.mxu0 0.0
    %619 = vmatpush1.msra.mxu0 0.0
    %620 = vmatprep.subr.mxu0 0.0
    %621 = vmatpush1.msra.mxu0 0.0
    %622 = vmatprep.subr.mxu0 0.0
    %623 = vmatpush1.msra.mxu0 0.0
    %624 = vmatprep.subr.mxu0 0.0
    %625 = vmatpush1.msra.mxu0 0.0
    %626 = vmatprep.subr.mxu0 0.0
    %627 = vmatpush1.msra.mxu0 0.0
    %628 = vmatprep.subr.mxu0 0.0
    %629 = vmatpush1.msra.mxu0 0.0
    %630 = vmatprep.subr.mxu0 0.0
    %631 = vmatpush1.msra.mxu0 0.0
    %632 = vmatprep.subr.mxu0 0.0
    %633 = vmatpush1.msra.mxu0 0.0
    %634 = vmatprep.subr.mxu0 0.0
    %635 = vmatpush1.msra.mxu0 0.0
    %636 = vmatprep.subr.mxu0 0.0
    %637 = vmatpush1.msra.mxu0 0.0
    %638 = vmatprep.subr.mxu0 0.0
    %639 = vmatpush1.msra.mxu0 0.0
    %640 = vmatprep.subr.mxu0 0.0
    %641 = vmatpush1.msra.mxu0 0.0
    %642 = vmatprep.subr.mxu0 0.0
    %643 = vmatpush1.msra.mxu0 0.0
    %644 = vmatprep.subr.mxu0 0.0
    %645 = vmatpush1.msra.mxu0 0.0
    %646 = vmatprep.subr.mxu0 0.0
    %647 = vmatpush1.msra.mxu0 0.0
    %648 = vmatprep.subr.mxu0 0.0
    %649 = vmatpush1.msra.mxu0 0.0
    %650 = vmatprep.subr.mxu0 0.0
    %651 = vmatpush1.msra.mxu0 0.0
    %652 = vmatprep.subr.mxu0 0.0
    %653 = vmatpush1.msra.mxu0 0.0
    %654 = vmatprep.subr.mxu0 0.0
    %655 = vmatpush1.msra.mxu0 0.0
    %656 = vmatprep.subr.mxu0 0.0
    %657 = vmatpush1.msra.mxu0 0.0
    %658 = vmatprep.subr.mxu0 0.0
    %659 = vmatpush1.msra.mxu0 0.0
    %660 = vmatprep.subr.mxu0 0.0
    %661 = vmatpush1.msra.mxu0 0.0
    %662 = vmatprep.subr.mxu0 0.0
    %663 = vmatpush1.msra.mxu0 0.0
    %664 = vmatprep.subr.mxu0 0.0
    %665 = vmatpush1.msra.mxu0 0.0
    %666 = vmatprep.subr.mxu0 0.0
    %667 = vmatpush1.msra.mxu0 0.0
    %668 = vmatprep.subr.mxu0 0.0
    %669 = vmatpush1.msra.mxu0 0.0
    %670 = vmatprep.subr.mxu0 0.0
    %671 = vmatpush1.msra.mxu0 0.0
    %672 = vmatprep.mubr.f32.mxu0 0.0
    %673 = vmatmul.mubr.f32.gmra.mrb[0].mxu0 %v535
    %v674 = vpop.f32.mrb[0].mxu0
    %v675 = vadd.f32 0.0, %v674
    %v676 = vpop.f32.mrb[0].mxu0
    %v677 = vadd.f32 0.0, %v676
    %678 = vdwg.mxu0
    %v679 = vld [vmem:[#allocation7] sm:$0xff]
    %v681 = vlaneseq
    %v682 = vshrl.u32 %v681, 7
    %v683 = vsub.s32 0, %v682
    %v684 = vrot.slane %v679, %v683
    %v685 = vlaneseq
    %v686 = vshrl.u32 %v685, 7
    %v687 = vsub.s32 1, %v686
    %v688 = vrot.slane %v679, %v687
    %v689 = vlaneseq
    %v690 = vshrl.u32 %v689, 7
    %v691 = vsub.s32 2, %v690
    %v692 = vrot.slane %v679, %v691
    %v693 = vlaneseq
    %v694 = vshrl.u32 %v693, 7
    %v695 = vsub.s32 3, %v694
    %v696 = vrot.slane %v679, %v695
    %v697 = vlaneseq
    %v698 = vshrl.u32 %v697, 7
    %v699 = vsub.s32 4, %v698
    %v700 = vrot.slane %v679, %v699
    %v701 = vlaneseq
    %v702 = vshrl.u32 %v701, 7
    %v703 = vsub.s32 5, %v702
    %v704 = vrot.slane %v679, %v703
    %v705 = vlaneseq
    %v706 = vshrl.u32 %v705, 7
    %v707 = vsub.s32 6, %v706
    %v708 = vrot.slane %v679, %v707
    %v709 = vlaneseq
    %v710 = vshrl.u32 %v709, 7
    %v711 = vsub.s32 7, %v710
    %v712 = vrot.slane %v679, %v711
    %v721 = vadd.f32 %v416, %v684
    %v722 = vadd.f32 %v418, %v688
    %v723 = vadd.f32 %v487, %v692
    %v724 = vadd.f32 %v489, %v696
    %v725 = vadd.f32 %v604, %v700
    %v726 = vadd.f32 %v606, %v704
    %v727 = vadd.f32 %v675, %v708
    %v728 = vadd.f32 %v677, %v712
    %v729 = vtanh.pop %v721
    %v730 = vtanh.pop %v722
    %v731 = vtanh.pop %v723
    %v732 = vtanh.pop %v724
    %v733 = vtanh.pop %v725
    %v734 = vtanh.pop %v726
    %v735 = vtanh.pop %v727
    %v736 = vtanh.pop %v728
    %v737 = vld [vmem:[#allocation8] sm:$0xff]
    %v738 = vld [vmem:[#allocation8 + $0x8] sm:$0xff]
    %v739 = vld [vmem:[#allocation8 + $0x10] sm:$0xff]
    %v740 = vld [vmem:[#allocation8 + $0x18] sm:$0xff]
    %v741 = vld [vmem:[#allocation8 + $0x20] sm:$0xff]
    %v742 = vld [vmem:[#allocation8 + $0x28] sm:$0xff]
    %v743 = vld [vmem:[#allocation8 + $0x30] sm:$0xff]
    %v744 = vld [vmem:[#allocation8 + $0x38] sm:$0xff]
    %v745 = vld [vmem:[#allocation8 + $0x40] sm:$0xff]
    %v746 = vld [vmem:[#allocation8 + $0x48] sm:$0xff]
    %v747 = vld [vmem:[#allocation8 + $0x50] sm:$0xff]
    %v748 = vld [vmem:[#allocation8 + $0x58] sm:$0xff]
    %v749 = vld [vmem:[#allocation8 + $0x60] sm:$0xff]
    %v750 = vld [vmem:[#allocation8 + $0x68] sm:$0xff]
    %v751 = vld [vmem:[#allocation8 + $0x70] sm:$0xff]
    %v752 = vld [vmem:[#allocation8 + $0x78] sm:$0xff]
    %v753 = vld [vmem:[#allocation8 + $0x80] sm:$0xff]
    %v754 = vld [vmem:[#allocation8 + $0x88] sm:$0xff]
    %v755 = vld [vmem:[#allocation8 + $0x90] sm:$0xff]
    %v756 = vld [vmem:[#allocation8 + $0x98] sm:$0xff]
    %v757 = vld [vmem:[#allocation8 + $0xa0] sm:$0xff]
    %v758 = vld [vmem:[#allocation8 + $0xa8] sm:$0xff]
    %v759 = vld [vmem:[#allocation8 + $0xb0] sm:$0xff]
    %v760 = vld [vmem:[#allocation8 + $0xb8] sm:$0xff]
    %v761 = vld [vmem:[#allocation8 + $0xc0] sm:$0xff]
    %v762 = vld [vmem:[#allocation8 + $0xc8] sm:$0xff]
    %v763 = vld [vmem:[#allocation8 + $0xd0] sm:$0xff]
    %v764 = vld [vmem:[#allocation8 + $0xd8] sm:$0xff]
    %v765 = vld [vmem:[#allocation8 + $0xe0] sm:$0xff]
    %v766 = vld [vmem:[#allocation8 + $0xe8] sm:$0xff]
    %v767 = vld [vmem:[#allocation8 + $0xf0] sm:$0xff]
    %v768 = vld [vmem:[#allocation8 + $0xf8] sm:$0xff]
    %v769 = vld [vmem:[#allocation8 + $0x100] sm:$0xff]
    %v770 = vld [vmem:[#allocation8 + $0x108] sm:$0xff]
    %v771 = vld [vmem:[#allocation8 + $0x110] sm:$0xff]
    %v772 = vld [vmem:[#allocation8 + $0x118] sm:$0xff]
    %v773 = vld [vmem:[#allocation8 + $0x120] sm:$0xff]
    %v774 = vld [vmem:[#allocation8 + $0x128] sm:$0xff]
    %v775 = vld [vmem:[#allocation8 + $0x130] sm:$0xff]
    %v776 = vld [vmem:[#allocation8 + $0x138] sm:$0xff]
    %v777 = vld [vmem:[#allocation8 + $0x140] sm:$0xff]
    %v778 = vld [vmem:[#allocation8 + $0x148] sm:$0xff]
    %v779 = vld [vmem:[#allocation8 + $0x150] sm:$0xff]
    %v780 = vld [vmem:[#allocation8 + $0x158] sm:$0xff]
    %v781 = vld [vmem:[#allocation8 + $0x160] sm:$0xff]
    %v782 = vld [vmem:[#allocation8 + $0x168] sm:$0xff]
    %v783 = vld [vmem:[#allocation8 + $0x170] sm:$0xff]
    %v784 = vld [vmem:[#allocation8 + $0x178] sm:$0xff]
    %v785 = vld [vmem:[#allocation8 + $0x180] sm:$0xff]
    %v786 = vld [vmem:[#allocation8 + $0x188] sm:$0xff]
    %v787 = vld [vmem:[#allocation8 + $0x190] sm:$0xff]
    %v788 = vld [vmem:[#allocation8 + $0x198] sm:$0xff]
    %v789 = vld [vmem:[#allocation8 + $0x1a0] sm:$0xff]
    %v790 = vld [vmem:[#allocation8 + $0x1a8] sm:$0xff]
    %v791 = vld [vmem:[#allocation8 + $0x1b0] sm:$0xff]
    %v792 = vld [vmem:[#allocation8 + $0x1b8] sm:$0xff]
    %v793 = vld [vmem:[#allocation8 + $0x1c0] sm:$0xff]
    %v794 = vld [vmem:[#allocation8 + $0x1c8] sm:$0xff]
    %v795 = vld [vmem:[#allocation8 + $0x1d0] sm:$0xff]
    %v796 = vld [vmem:[#allocation8 + $0x1d8] sm:$0xff]
    %v797 = vld [vmem:[#allocation8 + $0x1e0] sm:$0xff]
    %v798 = vld [vmem:[#allocation8 + $0x1e8] sm:$0xff]
    %v799 = vld [vmem:[#allocation8 + $0x1f0] sm:$0xff]
    %v800 = vld [vmem:[#allocation8 + $0x1f8] sm:$0xff]
    %v801 = vld [vmem:[#allocation8 + $0x200] sm:$0xff]
    %v802 = vld [vmem:[#allocation8 + $0x208] sm:$0xff]
    %v803 = vld [vmem:[#allocation8 + $0x210] sm:$0xff]
    %v804 = vld [vmem:[#allocation8 + $0x218] sm:$0xff]
    %v805 = vld [vmem:[#allocation8 + $0x220] sm:$0xff]
    %v806 = vld [vmem:[#allocation8 + $0x228] sm:$0xff]
    %v807 = vld [vmem:[#allocation8 + $0x230] sm:$0xff]
    %v808 = vld [vmem:[#allocation8 + $0x238] sm:$0xff]
    %v809 = vld [vmem:[#allocation8 + $0x240] sm:$0xff]
    %v810 = vld [vmem:[#allocation8 + $0x248] sm:$0xff]
    %v811 = vld [vmem:[#allocation8 + $0x250] sm:$0xff]
    %v812 = vld [vmem:[#allocation8 + $0x258] sm:$0xff]
    %v813 = vld [vmem:[#allocation8 + $0x260] sm:$0xff]
    %v814 = vld [vmem:[#allocation8 + $0x268] sm:$0xff]
    %v815 = vld [vmem:[#allocation8 + $0x270] sm:$0xff]
    %v816 = vld [vmem:[#allocation8 + $0x278] sm:$0xff]
    %v817 = vld [vmem:[#allocation8 + $0x280] sm:$0xff]
    %v818 = vld [vmem:[#allocation8 + $0x288] sm:$0xff]
    %v819 = vld [vmem:[#allocation8 + $0x290] sm:$0xff]
    %v820 = vld [vmem:[#allocation8 + $0x298] sm:$0xff]
    %v821 = vld [vmem:[#allocation8 + $0x2a0] sm:$0xff]
    %v822 = vld [vmem:[#allocation8 + $0x2a8] sm:$0xff]
    %v823 = vld [vmem:[#allocation8 + $0x2b0] sm:$0xff]
    %v824 = vld [vmem:[#allocation8 + $0x2b8] sm:$0xff]
    %v825 = vld [vmem:[#allocation8 + $0x2c0] sm:$0xff]
    %v826 = vld [vmem:[#allocation8 + $0x2c8] sm:$0xff]
    %v827 = vld [vmem:[#allocation8 + $0x2d0] sm:$0xff]
    %v828 = vld [vmem:[#allocation8 + $0x2d8] sm:$0xff]
    %v829 = vld [vmem:[#allocation8 + $0x2e0] sm:$0xff]
    %v830 = vld [vmem:[#allocation8 + $0x2e8] sm:$0xff]
    %v831 = vld [vmem:[#allocation8 + $0x2f0] sm:$0xff]
    %v832 = vld [vmem:[#allocation8 + $0x2f8] sm:$0xff]
    %v833 = vld [vmem:[#allocation8 + $0x300] sm:$0xff]
    %v834 = vld [vmem:[#allocation8 + $0x308] sm:$0xff]
    %v835 = vld [vmem:[#allocation8 + $0x310] sm:$0xff]
    %v836 = vld [vmem:[#allocation8 + $0x318] sm:$0xff]
    %v837 = vld [vmem:[#allocation8 + $0x320] sm:$0xff]
    %v838 = vld [vmem:[#allocation8 + $0x328] sm:$0xff]
    %v839 = vld [vmem:[#allocation8 + $0x330] sm:$0xff]
    %v840 = vld [vmem:[#allocation8 + $0x338] sm:$0xff]
    %v841 = vld [vmem:[#allocation8 + $0x340] sm:$0xff]
    %v842 = vld [vmem:[#allocation8 + $0x348] sm:$0xff]
    %v843 = vld [vmem:[#allocation8 + $0x350] sm:$0xff]
    %v844 = vld [vmem:[#allocation8 + $0x358] sm:$0xff]
    %v845 = vld [vmem:[#allocation8 + $0x360] sm:$0xff]
    %v846 = vld [vmem:[#allocation8 + $0x368] sm:$0xff]
    %v847 = vld [vmem:[#allocation8 + $0x370] sm:$0xff]
    %v848 = vld [vmem:[#allocation8 + $0x378] sm:$0xff]
    %v849 = vld [vmem:[#allocation8 + $0x380] sm:$0xff]
    %v850 = vld [vmem:[#allocation8 + $0x388] sm:$0xff]
    %v851 = vld [vmem:[#allocation8 + $0x390] sm:$0xff]
    %v852 = vld [vmem:[#allocation8 + $0x398] sm:$0xff]
    %v853 = vld [vmem:[#allocation8 + $0x3a0] sm:$0xff]
    %v854 = vld [vmem:[#allocation8 + $0x3a8] sm:$0xff]
    %v855 = vld [vmem:[#allocation8 + $0x3b0] sm:$0xff]
    %v856 = vld [vmem:[#allocation8 + $0x3b8] sm:$0xff]
    %v857 = vld [vmem:[#allocation8 + $0x3c0] sm:$0xff]
    %v858 = vld [vmem:[#allocation8 + $0x3c8] sm:$0xff]
    %v859 = vld [vmem:[#allocation8 + $0x3d0] sm:$0xff]
    %v860 = vld [vmem:[#allocation8 + $0x3d8] sm:$0xff]
    %v861 = vld [vmem:[#allocation8 + $0x3e0] sm:$0xff]
    %v862 = vld [vmem:[#allocation8 + $0x3e8] sm:$0xff]
    %v863 = vld [vmem:[#allocation8 + $0x3f0] sm:$0xff]
    %v864 = vld [vmem:[#allocation8 + $0x3f8] sm:$0xff]
    %v865 = vld [vmem:[%s5] sm:$0x1]
    %v867 = vlaneseq
    %v868 = vshrl.u32 %v867, 7
    %v869 = vsub.s32 0, %v868
    %v870 = vrot.slane %v865, %v869
    %872 = vmatprep.subr.mxu0 0.0
    %873 = vmatpush1.msra.mxu0 %v737
    %874 = vmatprep.subr.mxu0 0.0
    %875 = vmatpush1.msra.mxu0 %v738
    %876 = vmatprep.subr.mxu0 0.0
    %877 = vmatpush1.msra.mxu0 %v739
    %878 = vmatprep.subr.mxu0 0.0
    %879 = vmatpush1.msra.mxu0 %v740
    %880 = vmatprep.subr.mxu0 0.0
    %881 = vmatpush1.msra.mxu0 %v741
    %882 = vmatprep.subr.mxu0 0.0
    %883 = vmatpush1.msra.mxu0 %v742
    %884 = vmatprep.subr.mxu0 0.0
    %885 = vmatpush1.msra.mxu0 %v743
    %886 = vmatprep.subr.mxu0 0.0
    %887 = vmatpush1.msra.mxu0 %v744
    %888 = vmatprep.subr.mxu0 0.0
    %889 = vmatpush1.msra.mxu0 %v745
    %890 = vmatprep.subr.mxu0 0.0
    %891 = vmatpush1.msra.mxu0 %v746
    %892 = vmatprep.subr.mxu0 0.0
    %893 = vmatpush1.msra.mxu0 %v747
    %894 = vmatprep.subr.mxu0 0.0
    %895 = vmatpush1.msra.mxu0 %v748
    %896 = vmatprep.subr.mxu0 0.0
    %897 = vmatpush1.msra.mxu0 %v749
    %898 = vmatprep.subr.mxu0 0.0
    %899 = vmatpush1.msra.mxu0 %v750
    %900 = vmatprep.subr.mxu0 0.0
    %901 = vmatpush1.msra.mxu0 %v751
    %902 = vmatprep.subr.mxu0 0.0
    %903 = vmatpush1.msra.mxu0 %v752
    %904 = vmatprep.subr.mxu0 0.0
    %905 = vmatpush1.msra.mxu0 %v753
    %906 = vmatprep.subr.mxu0 0.0
    %907 = vmatpush1.msra.mxu0 %v754
    %908 = vmatprep.subr.mxu0 0.0
    %909 = vmatpush1.msra.mxu0 %v755
    %910 = vmatprep.subr.mxu0 0.0
    %911 = vmatpush1.msra.mxu0 %v756
    %912 = vmatprep.subr.mxu0 0.0
    %913 = vmatpush1.msra.mxu0 %v757
    %914 = vmatprep.subr.mxu0 0.0
    %915 = vmatpush1.msra.mxu0 %v758
    %916 = vmatprep.subr.mxu0 0.0
    %917 = vmatpush1.msra.mxu0 %v759
    %918 = vmatprep.subr.mxu0 0.0
    %919 = vmatpush1.msra.mxu0 %v760
    %920 = vmatprep.subr.mxu0 0.0
    %921 = vmatpush1.msra.mxu0 %v761
    %922 = vmatprep.subr.mxu0 0.0
    %923 = vmatpush1.msra.mxu0 %v762
    %924 = vmatprep.subr.mxu0 0.0
    %925 = vmatpush1.msra.mxu0 %v763
    %926 = vmatprep.subr.mxu0 0.0
    %927 = vmatpush1.msra.mxu0 %v764
    %928 = vmatprep.subr.mxu0 0.0
    %929 = vmatpush1.msra.mxu0 %v765
    %930 = vmatprep.subr.mxu0 0.0
    %931 = vmatpush1.msra.mxu0 %v766
    %932 = vmatprep.subr.mxu0 0.0
    %933 = vmatpush1.msra.mxu0 %v767
    %934 = vmatprep.subr.mxu0 0.0
    %935 = vmatpush1.msra.mxu0 %v768
    %936 = vmatprep.mubr.f32.mxu0 %v730
    %937 = vmatmul.mubr.f32.gmra.mrb[0].mxu0 %v729
    %v938 = vpop.f32.mrb[0].mxu0
    %v939 = vadd.f32 %v870, %v938
    %v940 = vpop.f32.mrb[0].mxu0
    %941 = vdwg.mxu0
    %942 = vmatprep.subr.mxu0 0.0
    %943 = vmatpush1.msra.mxu0 %v769
    %944 = vmatprep.subr.mxu0 0.0
    %945 = vmatpush1.msra.mxu0 %v770
    %946 = vmatprep.subr.mxu0 0.0
    %947 = vmatpush1.msra.mxu0 %v771
    %948 = vmatprep.subr.mxu0 0.0
    %949 = vmatpush1.msra.mxu0 %v772
    %950 = vmatprep.subr.mxu0 0.0
    %951 = vmatpush1.msra.mxu0 %v773
    %952 = vmatprep.subr.mxu0 0.0
    %953 = vmatpush1.msra.mxu0 %v774
    %954 = vmatprep.subr.mxu0 0.0
    %955 = vmatpush1.msra.mxu0 %v775
    %956 = vmatprep.subr.mxu0 0.0
    %957 = vmatpush1.msra.mxu0 %v776
    %958 = vmatprep.subr.mxu0 0.0
    %959 = vmatpush1.msra.mxu0 %v777
    %960 = vmatprep.subr.mxu0 0.0
    %961 = vmatpush1.msra.mxu0 %v778
    %962 = vmatprep.subr.mxu0 0.0
    %963 = vmatpush1.msra.mxu0 %v779
    %964 = vmatprep.subr.mxu0 0.0
    %965 = vmatpush1.msra.mxu0 %v780
    %966 = vmatprep.subr.mxu0 0.0
    %967 = vmatpush1.msra.mxu0 %v781
    %968 = vmatprep.subr.mxu0 0.0
    %969 = vmatpush1.msra.mxu0 %v782
    %970 = vmatprep.subr.mxu0 0.0
    %971 = vmatpush1.msra.mxu0 %v783
    %972 = vmatprep.subr.mxu0 0.0
    %973 = vmatpush1.msra.mxu0 %v784
    %974 = vmatprep.subr.mxu0 0.0
    %975 = vmatpush1.msra.mxu0 %v785
    %976 = vmatprep.subr.mxu0 0.0
    %977 = vmatpush1.msra.mxu0 %v786
    %978 = vmatprep.subr.mxu0 0.0
    %979 = vmatpush1.msra.mxu0 %v787
    %980 = vmatprep.subr.mxu0 0.0
    %981 = vmatpush1.msra.mxu0 %v788
    %982 = vmatprep.subr.mxu0 0.0
    %983 = vmatpush1.msra.mxu0 %v789
    %984 = vmatprep.subr.mxu0 0.0
    %985 = vmatpush1.msra.mxu0 %v790
    %986 = vmatprep.subr.mxu0 0.0
    %987 = vmatpush1.msra.mxu0 %v791
    %988 = vmatprep.subr.mxu0 0.0
    %989 = vmatpush1.msra.mxu0 %v792
    %990 = vmatprep.subr.mxu0 0.0
    %991 = vmatpush1.msra.mxu0 %v793
    %992 = vmatprep.subr.mxu0 0.0
    %993 = vmatpush1.msra.mxu0 %v794
    %994 = vmatprep.subr.mxu0 0.0
    %995 = vmatpush1.msra.mxu0 %v795
    %996 = vmatprep.subr.mxu0 0.0
    %997 = vmatpush1.msra.mxu0 %v796
    %998 = vmatprep.subr.mxu0 0.0
    %999 = vmatpush1.msra.mxu0 %v797
    %1000 = vmatprep.subr.mxu0 0.0
    %1001 = vmatpush1.msra.mxu0 %v798
    %1002 = vmatprep.subr.mxu0 0.0
    %1003 = vmatpush1.msra.mxu0 %v799
    %1004 = vmatprep.subr.mxu0 0.0
    %1005 = vmatpush1.msra.mxu0 %v800
    %1006 = vmatprep.mubr.f32.mxu0 %v732
    %1007 = vmatmul.mubr.f32.gmra.mrb[0].mxu0 %v731
    %v1008 = vpop.f32.mrb[0].mxu0
    %v1009 = vadd.f32 %v939, %v1008
    %v1010 = vpop.f32.mrb[0].mxu0
    %1011 = vdwg.mxu0
    %1012 = vmatprep.subr.mxu0 0.0
    %1013 = vmatpush1.msra.mxu0 %v801
    %1014 = vmatprep.subr.mxu0 0.0
    %1015 = vmatpush1.msra.mxu0 %v802
    %1016 = vmatprep.subr.mxu0 0.0
    %1017 = vmatpush1.msra.mxu0 %v803
    %1018 = vmatprep.subr.mxu0 0.0
    %1019 = vmatpush1.msra.mxu0 %v804
    %1020 = vmatprep.subr.mxu0 0.0
    %1021 = vmatpush1.msra.mxu0 %v805
    %1022 = vmatprep.subr.mxu0 0.0
    %1023 = vmatpush1.msra.mxu0 %v806
    %1024 = vmatprep.subr.mxu0 0.0
    %1025 = vmatpush1.msra.mxu0 %v807
    %1026 = vmatprep.subr.mxu0 0.0
    %1027 = vmatpush1.msra.mxu0 %v808
    %1028 = vmatprep.subr.mxu0 0.0
    %1029 = vmatpush1.msra.mxu0 %v809
    %1030 = vmatprep.subr.mxu0 0.0
    %1031 = vmatpush1.msra.mxu0 %v810
    %1032 = vmatprep.subr.mxu0 0.0
    %1033 = vmatpush1.msra.mxu0 %v811
    %1034 = vmatprep.subr.mxu0 0.0
    %1035 = vmatpush1.msra.mxu0 %v812
    %1036 = vmatprep.subr.mxu0 0.0
    %1037 = vmatpush1.msra.mxu0 %v813
    %1038 = vmatprep.subr.mxu0 0.0
    %1039 = vmatpush1.msra.mxu0 %v814
    %1040 = vmatprep.subr.mxu0 0.0
    %1041 = vmatpush1.msra.mxu0 %v815
    %1042 = vmatprep.subr.mxu0 0.0
    %1043 = vmatpush1.msra.mxu0 %v816
    %1044 = vmatprep.subr.mxu0 0.0
    %1045 = vmatpush1.msra.mxu0 %v817
    %1046 = vmatprep.subr.mxu0 0.0
    %1047 = vmatpush1.msra.mxu0 %v818
    %1048 = vmatprep.subr.mxu0 0.0
    %1049 = vmatpush1.msra.mxu0 %v819
    %1050 = vmatprep.subr.mxu0 0.0
    %1051 = vmatpush1.msra.mxu0 %v820
    %1052 = vmatprep.subr.mxu0 0.0
    %1053 = vmatpush1.msra.mxu0 %v821
    %1054 = vmatprep.subr.mxu0 0.0
    %1055 = vmatpush1.msra.mxu0 %v822
    %1056 = vmatprep.subr.mxu0 0.0
    %1057 = vmatpush1.msra.mxu0 %v823
    %1058 = vmatprep.subr.mxu0 0.0
    %1059 = vmatpush1.msra.mxu0 %v824
    %1060 = vmatprep.subr.mxu0 0.0
    %1061 = vmatpush1.msra.mxu0 %v825
    %1062 = vmatprep.subr.mxu0 0.0
    %1063 = vmatpush1.msra.mxu0 %v826
    %1064 = vmatprep.subr.mxu0 0.0
    %1065 = vmatpush1.msra.mxu0 %v827
    %1066 = vmatprep.subr.mxu0 0.0
    %1067 = vmatpush1.msra.mxu0 %v828
    %1068 = vmatprep.subr.mxu0 0.0
    %1069 = vmatpush1.msra.mxu0 %v829
    %1070 = vmatprep.subr.mxu0 0.0
    %1071 = vmatpush1.msra.mxu0 %v830
    %1072 = vmatprep.subr.mxu0 0.0
    %1073 = vmatpush1.msra.mxu0 %v831
    %1074 = vmatprep.subr.mxu0 0.0
    %1075 = vmatpush1.msra.mxu0 %v832
    %1076 = vmatprep.mubr.f32.mxu0 %v734
    %1077 = vmatmul.mubr.f32.gmra.mrb[0].mxu0 %v733
    %v1078 = vpop.f32.mrb[0].mxu0
    %v1079 = vadd.f32 %v1009, %v1078
    %v1080 = vpop.f32.mrb[0].mxu0
    %1081 = vdwg.mxu0
    %1082 = vmatprep.subr.mxu0 0.0
    %1083 = vmatpush1.msra.mxu0 %v833
    %1084 = vmatprep.subr.mxu0 0.0
    %1085 = vmatpush1.msra.mxu0 %v834
    %1086 = vmatprep.subr.mxu0 0.0
    %1087 = vmatpush1.msra.mxu0 %v835
    %1088 = vmatprep.subr.mxu0 0.0
    %1089 = vmatpush1.msra.mxu0 %v836
    %1090 = vmatprep.subr.mxu0 0.0
    %1091 = vmatpush1.msra.mxu0 %v837
    %1092 = vmatprep.subr.mxu0 0.0
    %1093 = vmatpush1.msra.mxu0 %v838
    %1094 = vmatprep.subr.mxu0 0.0
    %1095 = vmatpush1.msra.mxu0 %v839
    %1096 = vmatprep.subr.mxu0 0.0
    %1097 = vmatpush1.msra.mxu0 %v840
    %1098 = vmatprep.subr.mxu0 0.0
    %1099 = vmatpush1.msra.mxu0 %v841
    %1100 = vmatprep.subr.mxu0 0.0
    %1101 = vmatpush1.msra.mxu0 %v842
    %1102 = vmatprep.subr.mxu0 0.0
    %1103 = vmatpush1.msra.mxu0 %v843
    %1104 = vmatprep.subr.mxu0 0.0
    %1105 = vmatpush1.msra.mxu0 %v844
    %1106 = vmatprep.subr.mxu0 0.0
    %1107 = vmatpush1.msra.mxu0 %v845
    %1108 = vmatprep.subr.mxu0 0.0
    %1109 = vmatpush1.msra.mxu0 %v846
    %1110 = vmatprep.subr.mxu0 0.0
    %1111 = vmatpush1.msra.mxu0 %v847
    %1112 = vmatprep.subr.mxu0 0.0
    %1113 = vmatpush1.msra.mxu0 %v848
    %1114 = vmatprep.subr.mxu0 0.0
    %1115 = vmatpush1.msra.mxu0 %v849
    %1116 = vmatprep.subr.mxu0 0.0
    %1117 = vmatpush1.msra.mxu0 %v850
    %1118 = vmatprep.subr.mxu0 0.0
    %1119 = vmatpush1.msra.mxu0 %v851
    %1120 = vmatprep.subr.mxu0 0.0
    %1121 = vmatpush1.msra.mxu0 %v852
    %1122 = vmatprep.subr.mxu0 0.0
    %1123 = vmatpush1.msra.mxu0 %v853
    %1124 = vmatprep.subr.mxu0 0.0
    %1125 = vmatpush1.msra.mxu0 %v854
    %1126 = vmatprep.subr.mxu0 0.0
    %1127 = vmatpush1.msra.mxu0 %v855
    %1128 = vmatprep.subr.mxu0 0.0
    %1129 = vmatpush1.msra.mxu0 %v856
    %1130 = vmatprep.subr.mxu0 0.0
    %1131 = vmatpush1.msra.mxu0 %v857
    %1132 = vmatprep.subr.mxu0 0.0
    %1133 = vmatpush1.msra.mxu0 %v858
    %1134 = vmatprep.subr.mxu0 0.0
    %1135 = vmatpush1.msra.mxu0 %v859
    %1136 = vmatprep.subr.mxu0 0.0
    %1137 = vmatpush1.msra.mxu0 %v860
    %1138 = vmatprep.subr.mxu0 0.0
    %1139 = vmatpush1.msra.mxu0 %v861
    %1140 = vmatprep.subr.mxu0 0.0
    %1141 = vmatpush1.msra.mxu0 %v862
    %1142 = vmatprep.subr.mxu0 0.0
    %1143 = vmatpush1.msra.mxu0 %v863
    %1144 = vmatprep.subr.mxu0 0.0
    %1145 = vmatpush1.msra.mxu0 %v864
    %1146 = vmatprep.mubr.f32.mxu0 %v736
    %1147 = vmatmul.mubr.f32.gmra.mrb[0].mxu0 %v735
    %v1148 = vpop.f32.mrb[0].mxu0
    %v1149 = vadd.f32 %v1079, %v1148
    %v1150 = vpop.f32.mrb[0].mxu0
    %1151 = vdwg.mxu0
    %v1152 = vld [vmem:[#allocation10] sm:$0xff]
    %v1153 = vld [vmem:[#allocation10 + $0x8] sm:$0xff]
    %1154 = vxpose.xlu0.b32.start [1/16] %v274, 128
    %1155 = vxpose.xlu0.b32.cont [2/16] 0.0, 128
    %1156 = vxpose.xlu0.b32.cont [3/16] 0.0, 128
    %1157 = vxpose.xlu0.b32.cont [4/16] 0.0, 128
    %1158 = vxpose.xlu0.b32.cont [5/16] 0.0, 128
    %1159 = vxpose.xlu0.b32.cont [6/16] 0.0, 128
    %1160 = vxpose.xlu0.b32.cont [7/16] 0.0, 128
    %1161 = vxpose.xlu0.b32.cont [8/16] 0.0, 128
    %1162 = vxpose.xlu0.b32.cont [9/16] 0.0, 128
    %1163 = vxpose.xlu0.b32.cont [10/16] 0.0, 128
    %1164 = vxpose.xlu0.b32.cont [11/16] 0.0, 128
    %1165 = vxpose.xlu0.b32.cont [12/16] 0.0, 128
    %1166 = vxpose.xlu0.b32.cont [13/16] 0.0, 128
    %1167 = vxpose.xlu0.b32.cont [14/16] 0.0, 128
    %1168 = vxpose.xlu0.b32.cont [15/16] 0.0, 128
    %1169 = vxpose.xlu0.b32.end [16/16] 0.0, 128
    %v1170 = vpop.trf.xlu0
    %v1171 = vpop.trf.xlu0
    %v1172 = vpop.trf.xlu0
    %v1173 = vpop.trf.xlu0
    %v1174 = vpop.trf.xlu0
    %v1175 = vpop.trf.xlu0
    %v1176 = vpop.trf.xlu0
    %v1177 = vpop.trf.xlu0
    %v1178 = vpop.trf.xlu0
    %v1179 = vpop.trf.xlu0
    %v1180 = vpop.trf.xlu0
    %v1181 = vpop.trf.xlu0
    %v1182 = vpop.trf.xlu0
    %v1183 = vpop.trf.xlu0
    %v1184 = vpop.trf.xlu0
    %v1185 = vpop.trf.xlu0
    %v1188 = vcombine.high %v1152, %v1152
    %v1189 = vcombine.high %v1153, %v1153
    %v1191 = vsel %vm133, %v1170, 0
    %v1193 = vsel %vm263, %v1152, 0
    %v1195 = vsel %vm263, %v1188, 0
    %v1197 = vsel %vm263, %v1153, 0
    %v1199 = vsel %vm263, %v1189, 0
    %1201 = vmatprep.subr.mxu0 %v1195
    %1202 = vmatpush1.msra.mxu0 %v1193
    %1203 = vmatprep.subr.mxu0 0.0
    %1204 = vmatpush1.msra.mxu0 0.0
    %1205 = vmatprep.subr.mxu0 0.0
    %1206 = vmatpush1.msra.mxu0 0.0
    %1207 = vmatprep.subr.mxu0 0.0
    %1208 = vmatpush1.msra.mxu0 0.0
    %1209 = vmatprep.subr.mxu0 0.0
    %1210 = vmatpush1.msra.mxu0 0.0
    %1211 = vmatprep.subr.mxu0 0.0
    %1212 = vmatpush1.msra.mxu0 0.0
    %1213 = vmatprep.subr.mxu0 0.0
    %1214 = vmatpush1.msra.mxu0 0.0
    %1215 = vmatprep.subr.mxu0 0.0
    %1216 = vmatpush1.msra.mxu0 0.0
    %1217 = vmatprep.subr.mxu0 0.0
    %1218 = vmatpush1.msra.mxu0 0.0
    %1219 = vmatprep.subr.mxu0 0.0
    %1220 = vmatpush1.msra.mxu0 0.0
    %1221 = vmatprep.subr.mxu0 0.0
    %1222 = vmatpush1.msra.mxu0 0.0
    %1223 = vmatprep.subr.mxu0 0.0
    %1224 = vmatpush1.msra.mxu0 0.0
    %1225 = vmatprep.subr.mxu0 0.0
    %1226 = vmatpush1.msra.mxu0 0.0
    %1227 = vmatprep.subr.mxu0 0.0
    %1228 = vmatpush1.msra.mxu0 0.0
    %1229 = vmatprep.subr.mxu0 0.0
    %1230 = vmatpush1.msra.mxu0 0.0
    %1231 = vmatprep.subr.mxu0 0.0
    %1232 = vmatpush1.msra.mxu0 0.0
    %1233 = vmatprep.subr.mxu0 0.0
    %1234 = vmatpush1.msra.mxu0 0.0
    %1235 = vmatprep.subr.mxu0 0.0
    %1236 = vmatpush1.msra.mxu0 0.0
    %1237 = vmatprep.subr.mxu0 0.0
    %1238 = vmatpush1.msra.mxu0 0.0
    %1239 = vmatprep.subr.mxu0 0.0
    %1240 = vmatpush1.msra.mxu0 0.0
    %1241 = vmatprep.subr.mxu0 0.0
    %1242 = vmatpush1.msra.mxu0 0.0
    %1243 = vmatprep.subr.mxu0 0.0
    %1244 = vmatpush1.msra.mxu0 0.0
    %1245 = vmatprep.subr.mxu0 0.0
    %1246 = vmatpush1.msra.mxu0 0.0
    %1247 = vmatprep.subr.mxu0 0.0
    %1248 = vmatpush1.msra.mxu0 0.0
    %1249 = vmatprep.subr.mxu0 0.0
    %1250 = vmatpush1.msra.mxu0 0.0
    %1251 = vmatprep.subr.mxu0 0.0
    %1252 = vmatpush1.msra.mxu0 0.0
    %1253 = vmatprep.subr.mxu0 0.0
    %1254 = vmatpush1.msra.mxu0 0.0
    %1255 = vmatprep.subr.mxu0 0.0
    %1256 = vmatpush1.msra.mxu0 0.0
    %1257 = vmatprep.subr.mxu0 0.0
    %1258 = vmatpush1.msra.mxu0 0.0
    %1259 = vmatprep.subr.mxu0 0.0
    %1260 = vmatpush1.msra.mxu0 0.0
    %1261 = vmatprep.subr.mxu0 0.0
    %1262 = vmatpush1.msra.mxu0 0.0
    %1263 = vmatprep.subr.mxu0 0.0
    %1264 = vmatpush1.msra.mxu0 0.0
    %1265 = vmatprep.mubr.f32.mxu0 0.0
    %1266 = vmatmul.mubr.f32.gmra.mrb[0].mxu0 %v1191
    %v1267 = vpop.f32.mrb[0].mxu0
    %v1268 = vadd.f32 0.0, %v1267
    %v1269 = vpop.f32.mrb[0].mxu0
    %v1270 = vadd.f32 0.0, %v1269
    %1271 = vdwg.mxu0
    %1272 = vmatprep.subr.mxu0 %v1199
    %1273 = vmatpush1.msra.mxu0 %v1197
    %1274 = vmatprep.subr.mxu0 0.0
    %1275 = vmatpush1.msra.mxu0 0.0
    %1276 = vmatprep.subr.mxu0 0.0
    %1277 = vmatpush1.msra.mxu0 0.0
    %1278 = vmatprep.subr.mxu0 0.0
    %1279 = vmatpush1.msra.mxu0 0.0
    %1280 = vmatprep.subr.mxu0 0.0
    %1281 = vmatpush1.msra.mxu0 0.0
    %1282 = vmatprep.subr.mxu0 0.0
    %1283 = vmatpush1.msra.mxu0 0.0
    %1284 = vmatprep.subr.mxu0 0.0
    %1285 = vmatpush1.msra.mxu0 0.0
    %1286 = vmatprep.subr.mxu0 0.0
    %1287 = vmatpush1.msra.mxu0 0.0
    %1288 = vmatprep.subr.mxu0 0.0
    %1289 = vmatpush1.msra.mxu0 0.0
    %1290 = vmatprep.subr.mxu0 0.0
    %1291 = vmatpush1.msra.mxu0 0.0
    %1292 = vmatprep.subr.mxu0 0.0
    %1293 = vmatpush1.msra.mxu0 0.0
    %1294 = vmatprep.subr.mxu0 0.0
    %1295 = vmatpush1.msra.mxu0 0.0
    %1296 = vmatprep.subr.mxu0 0.0
    %1297 = vmatpush1.msra.mxu0 0.0
    %1298 = vmatprep.subr.mxu0 0.0
    %1299 = vmatpush1.msra.mxu0 0.0
    %1300 = vmatprep.subr.mxu0 0.0
    %1301 = vmatpush1.msra.mxu0 0.0
    %1302 = vmatprep.subr.mxu0 0.0
    %1303 = vmatpush1.msra.mxu0 0.0
    %1304 = vmatprep.subr.mxu0 0.0
    %1305 = vmatpush1.msra.mxu0 0.0
    %1306 = vmatprep.subr.mxu0 0.0
    %1307 = vmatpush1.msra.mxu0 0.0
    %1308 = vmatprep.subr.mxu0 0.0
    %1309 = vmatpush1.msra.mxu0 0.0
    %1310 = vmatprep.subr.mxu0 0.0
    %1311 = vmatpush1.msra.mxu0 0.0
    %1312 = vmatprep.subr.mxu0 0.0
    %1313 = vmatpush1.msra.mxu0 0.0
    %1314 = vmatprep.subr.mxu0 0.0
    %1315 = vmatpush1.msra.mxu0 0.0
    %1316 = vmatprep.subr.mxu0 0.0
    %1317 = vmatpush1.msra.mxu0 0.0
    %1318 = vmatprep.subr.mxu0 0.0
    %1319 = vmatpush1.msra.mxu0 0.0
    %1320 = vmatprep.subr.mxu0 0.0
    %1321 = vmatpush1.msra.mxu0 0.0
    %1322 = vmatprep.subr.mxu0 0.0
    %1323 = vmatpush1.msra.mxu0 0.0
    %1324 = vmatprep.subr.mxu0 0.0
    %1325 = vmatpush1.msra.mxu0 0.0
    %1326 = vmatprep.subr.mxu0 0.0
    %1327 = vmatpush1.msra.mxu0 0.0
    %1328 = vmatprep.subr.mxu0 0.0
    %1329 = vmatpush1.msra.mxu0 0.0
    %1330 = vmatprep.subr.mxu0 0.0
    %1331 = vmatpush1.msra.mxu0 0.0
    %1332 = vmatprep.subr.mxu0 0.0
    %1333 = vmatpush1.msra.mxu0 0.0
    %1334 = vmatprep.subr.mxu0 0.0
    %1335 = vmatpush1.msra.mxu0 0.0
    %1336 = vmatprep.mubr.f32.mxu0 0.0
    %1337 = vmatmul.mubr.f32.gmra.mrb[0].mxu0 %v1191
    %v1338 = vpop.f32.mrb[0].mxu0
    %v1339 = vadd.f32 0.0, %v1338
    %v1340 = vpop.f32.mrb[0].mxu0
    %v1341 = vadd.f32 0.0, %v1340
    %1342 = vdwg.mxu0
    %v1343 = vld [vmem:[%s7] sm:$0xff]
    %v1344 = vld [vmem:[%s7 + $0x8] sm:$0xff]
    %v1345 = vld [vmem:[%s7 + $0x10] sm:$0xff]
    %v1346 = vld [vmem:[%s7 + $0x18] sm:$0xff]
    %v1347 = vld [vmem:[%s7 + $0x20] sm:$0xff]
    %v1348 = vld [vmem:[%s7 + $0x28] sm:$0xff]
    %v1349 = vld [vmem:[%s7 + $0x30] sm:$0xff]
    %v1350 = vld [vmem:[%s7 + $0x38] sm:$0xff]
    %1351 = vxpose.xlu0.b32.start [1/16] %v134, 128
    %1352 = vxpose.xlu0.b32.cont [2/16] %v135, 128
    %1353 = vxpose.xlu0.b32.cont [3/16] 0.0, 128
    %1354 = vxpose.xlu0.b32.cont [4/16] 0.0, 128
    %1355 = vxpose.xlu0.b32.cont [5/16] 0.0, 128
    %1356 = vxpose.xlu0.b32.cont [6/16] 0.0, 128
    %1357 = vxpose.xlu0.b32.cont [7/16] 0.0, 128
    %1358 = vxpose.xlu0.b32.cont [8/16] 0.0, 128
    %1359 = vxpose.xlu0.b32.cont [9/16] 0.0, 128
    %1360 = vxpose.xlu0.b32.cont [10/16] 0.0, 128
    %1361 = vxpose.xlu0.b32.cont [11/16] 0.0, 128
    %1362 = vxpose.xlu0.b32.cont [12/16] 0.0, 128
    %1363 = vxpose.xlu0.b32.cont [13/16] 0.0, 128
    %1364 = vxpose.xlu0.b32.cont [14/16] 0.0, 128
    %1365 = vxpose.xlu0.b32.cont [15/16] 0.0, 128
    %1366 = vxpose.xlu0.b32.end [16/16] 0.0, 128
    %v1367 = vpop.trf.xlu0
    %v1368 = vpop.trf.xlu0
    %v1369 = vpop.trf.xlu0
    %v1370 = vpop.trf.xlu0
    %v1371 = vpop.trf.xlu0
    %v1372 = vpop.trf.xlu0
    %v1373 = vpop.trf.xlu0
    %v1374 = vpop.trf.xlu0
    %v1375 = vpop.trf.xlu0
    %v1376 = vpop.trf.xlu0
    %v1377 = vpop.trf.xlu0
    %v1378 = vpop.trf.xlu0
    %v1379 = vpop.trf.xlu0
    %v1380 = vpop.trf.xlu0
    %v1381 = vpop.trf.xlu0
    %v1382 = vpop.trf.xlu0
    %v1384 = vsel %vm533, %v1367, 0
    %1386 = vmatprep.subr.mxu0 %v1344
    %1387 = vmatpush1.msra.mxu0 %v1343
    %1388 = vmatprep.subr.mxu0 %v1348
    %1389 = vmatpush1.msra.mxu0 %v1347
    %1390 = vmatprep.subr.mxu0 0.0
    %1391 = vmatpush1.msra.mxu0 0.0
    %1392 = vmatprep.subr.mxu0 0.0
    %1393 = vmatpush1.msra.mxu0 0.0
    %1394 = vmatprep.subr.mxu0 0.0
    %1395 = vmatpush1.msra.mxu0 0.0
    %1396 = vmatprep.subr.mxu0 0.0
    %1397 = vmatpush1.msra.mxu0 0.0
    %1398 = vmatprep.subr.mxu0 0.0
    %1399 = vmatpush1.msra.mxu0 0.0
    %1400 = vmatprep.subr.mxu0 0.0
    %1401 = vmatpush1.msra.mxu0 0.0
    %1402 = vmatprep.subr.mxu0 0.0
    %1403 = vmatpush1.msra.mxu0 0.0
    %1404 = vmatprep.subr.mxu0 0.0
    %1405 = vmatpush1.msra.mxu0 0.0
    %1406 = vmatprep.subr.mxu0 0.0
    %1407 = vmatpush1.msra.mxu0 0.0
    %1408 = vmatprep.subr.mxu0 0.0
    %1409 = vmatpush1.msra.mxu0 0.0
    %1410 = vmatprep.subr.mxu0 0.0
    %1411 = vmatpush1.msra.mxu0 0.0
    %1412 = vmatprep.subr.mxu0 0.0
    %1413 = vmatpush1.msra.mxu0 0.0
    %1414 = vmatprep.subr.mxu0 0.0
    %1415 = vmatpush1.msra.mxu0 0.0
    %1416 = vmatprep.subr.mxu0 0.0
    %1417 = vmatpush1.msra.mxu0 0.0
    %1418 = vmatprep.subr.mxu0 0.0
    %1419 = vmatpush1.msra.mxu0 0.0
    %1420 = vmatprep.subr.mxu0 0.0
    %1421 = vmatpush1.msra.mxu0 0.0
    %1422 = vmatprep.subr.mxu0 0.0
    %1423 = vmatpush1.msra.mxu0 0.0
    %1424 = vmatprep.subr.mxu0 0.0
    %1425 = vmatpush1.msra.mxu0 0.0
    %1426 = vmatprep.subr.mxu0 0.0
    %1427 = vmatpush1.msra.mxu0 0.0
    %1428 = vmatprep.subr.mxu0 0.0
    %1429 = vmatpush1.msra.mxu0 0.0
    %1430 = vmatprep.subr.mxu0 0.0
    %1431 = vmatpush1.msra.mxu0 0.0
    %1432 = vmatprep.subr.mxu0 0.0
    %1433 = vmatpush1.msra.mxu0 0.0
    %1434 = vmatprep.subr.mxu0 0.0
    %1435 = vmatpush1.msra.mxu0 0.0
    %1436 = vmatprep.subr.mxu0 0.0
    %1437 = vmatpush1.msra.mxu0 0.0
    %1438 = vmatprep.subr.mxu0 0.0
    %1439 = vmatpush1.msra.mxu0 0.0
    %1440 = vmatprep.subr.mxu0 0.0
    %1441 = vmatpush1.msra.mxu0 0.0
    %1442 = vmatprep.subr.mxu0 0.0
    %1443 = vmatpush1.msra.mxu0 0.0
    %1444 = vmatprep.subr.mxu0 0.0
    %1445 = vmatpush1.msra.mxu0 0.0
    %1446 = vmatprep.subr.mxu0 0.0
    %1447 = vmatpush1.msra.mxu0 0.0
    %1448 = vmatprep.subr.mxu0 0.0
    %1449 = vmatpush1.msra.mxu0 0.0
    %1450 = vmatprep.mubr.f32.mxu0 0.0
    %1451 = vmatmul.mubr.f32.gmra.mrb[0].mxu0 %v1384
    %v1452 = vpop.f32.mrb[0].mxu0
    %v1453 = vadd.f32 0.0, %v1452
    %v1454 = vpop.f32.mrb[0].mxu0
    %v1455 = vadd.f32 0.0, %v1454
    %1456 = vdwg.mxu0
    %1457 = vmatprep.subr.mxu0 %v1346
    %1458 = vmatpush1.msra.mxu0 %v1345
    %1459 = vmatprep.subr.mxu0 %v1350
    %1460 = vmatpush1.msra.mxu0 %v1349
    %1461 = vmatprep.subr.mxu0 0.0
    %1462 = vmatpush1.msra.mxu0 0.0
    %1463 = vmatprep.subr.mxu0 0.0
    %1464 = vmatpush1.msra.mxu0 0.0
    %1465 = vmatprep.subr.mxu0 0.0
    %1466 = vmatpush1.msra.mxu0 0.0
    %1467 = vmatprep.subr.mxu0 0.0
    %1468 = vmatpush1.msra.mxu0 0.0
    %1469 = vmatprep.subr.mxu0 0.0
    %1470 = vmatpush1.msra.mxu0 0.0
    %1471 = vmatprep.subr.mxu0 0.0
    %1472 = vmatpush1.msra.mxu0 0.0
    %1473 = vmatprep.subr.mxu0 0.0
    %1474 = vmatpush1.msra.mxu0 0.0
    %1475 = vmatprep.subr.mxu0 0.0
    %1476 = vmatpush1.msra.mxu0 0.0
    %1477 = vmatprep.subr.mxu0 0.0
    %1478 = vmatpush1.msra.mxu0 0.0
    %1479 = vmatprep.subr.mxu0 0.0
    %1480 = vmatpush1.msra.mxu0 0.0
    %1481 = vmatprep.subr.mxu0 0.0
    %1482 = vmatpush1.msra.mxu0 0.0
    %1483 = vmatprep.subr.mxu0 0.0
    %1484 = vmatpush1.msra.mxu0 0.0
    %1485 = vmatprep.subr.mxu0 0.0
    %1486 = vmatpush1.msra.mxu0 0.0
    %1487 = vmatprep.subr.mxu0 0.0
    %1488 = vmatpush1.msra.mxu0 0.0
    %1489 = vmatprep.subr.mxu0 0.0
    %1490 = vmatpush1.msra.mxu0 0.0
    %1491 = vmatprep.subr.mxu0 0.0
    %1492 = vmatpush1.msra.mxu0 0.0
    %1493 = vmatprep.subr.mxu0 0.0
    %1494 = vmatpush1.msra.mxu0 0.0
    %1495 = vmatprep.subr.mxu0 0.0
    %1496 = vmatpush1.msra.mxu0 0.0
    %1497 = vmatprep.subr.mxu0 0.0
    %1498 = vmatpush1.msra.mxu0 0.0
    %1499 = vmatprep.subr.mxu0 0.0
    %1500 = vmatpush1.msra.mxu0 0.0
    %1501 = vmatprep.subr.mxu0 0.0
    %1502 = vmatpush1.msra.mxu0 0.0
    %1503 = vmatprep.subr.mxu0 0.0
    %1504 = vmatpush1.msra.mxu0 0.0
    %1505 = vmatprep.subr.mxu0 0.0
    %1506 = vmatpush1.msra.mxu0 0.0
    %1507 = vmatprep.subr.mxu0 0.0
    %1508 = vmatpush1.msra.mxu0 0.0
    %1509 = vmatprep.subr.mxu0 0.0
    %1510 = vmatpush1.msra.mxu0 0.0
    %1511 = vmatprep.subr.mxu0 0.0
    %1512 = vmatpush1.msra.mxu0 0.0
    %1513 = vmatprep.subr.mxu0 0.0
    %1514 = vmatpush1.msra.mxu0 0.0
    %1515 = vmatprep.subr.mxu0 0.0
    %1516 = vmatpush1.msra.mxu0 0.0
    %1517 = vmatprep.subr.mxu0 0.0
    %1518 = vmatpush1.msra.mxu0 0.0
    %1519 = vmatprep.subr.mxu0 0.0
    %1520 = vmatpush1.msra.mxu0 0.0
    %1521 = vmatprep.mubr.f32.mxu0 0.0
    %1522 = vmatmul.mubr.f32.gmra.mrb[0].mxu0 %v1384
    %v1523 = vpop.f32.mrb[0].mxu0
    %v1524 = vadd.f32 0.0, %v1523
    %v1525 = vpop.f32.mrb[0].mxu0
    %v1526 = vadd.f32 0.0, %v1525
    %1527 = vdwg.mxu0
    %v1528 = vld [vmem:[%s8] sm:$0xff]
    %v1530 = vlaneseq
    %v1531 = vshrl.u32 %v1530, 7
    %v1532 = vsub.s32 0, %v1531
    %v1533 = vrot.slane %v1528, %v1532
    %v1534 = vlaneseq
    %v1535 = vshrl.u32 %v1534, 7
    %v1536 = vsub.s32 1, %v1535
    %v1537 = vrot.slane %v1528, %v1536
    %v1538 = vlaneseq
    %v1539 = vshrl.u32 %v1538, 7
    %v1540 = vsub.s32 2, %v1539
    %v1541 = vrot.slane %v1528, %v1540
    %v1542 = vlaneseq
    %v1543 = vshrl.u32 %v1542, 7
    %v1544 = vsub.s32 3, %v1543
    %v1545 = vrot.slane %v1528, %v1544
    %v1546 = vlaneseq
    %v1547 = vshrl.u32 %v1546, 7
    %v1548 = vsub.s32 4, %v1547
    %v1549 = vrot.slane %v1528, %v1548
    %v1550 = vlaneseq
    %v1551 = vshrl.u32 %v1550, 7
    %v1552 = vsub.s32 5, %v1551
    %v1553 = vrot.slane %v1528, %v1552
    %v1554 = vlaneseq
    %v1555 = vshrl.u32 %v1554, 7
    %v1556 = vsub.s32 6, %v1555
    %v1557 = vrot.slane %v1528, %v1556
    %v1558 = vlaneseq
    %v1559 = vshrl.u32 %v1558, 7
    %v1560 = vsub.s32 7, %v1559
    %v1561 = vrot.slane %v1528, %v1560
    %v1570 = vadd.f32 %v1268, %v1533
    %v1571 = vadd.f32 %v1270, %v1537
    %v1572 = vadd.f32 %v1339, %v1541
    %v1573 = vadd.f32 %v1341, %v1545
    %v1574 = vadd.f32 %v1453, %v1549
    %v1575 = vadd.f32 %v1455, %v1553
    %v1576 = vadd.f32 %v1524, %v1557
    %v1577 = vadd.f32 %v1526, %v1561
    %v1578 = vmax.f32 %v1570, 0.0
    %v1579 = vmax.f32 %v1571, 0.0
    %v1580 = vmax.f32 %v1572, 0.0
    %v1581 = vmax.f32 %v1573, 0.0
    %v1582 = vmax.f32 %v1574, 0.0
    %v1583 = vmax.f32 %v1575, 0.0
    %v1584 = vmax.f32 %v1576, 0.0
    %v1585 = vmax.f32 %v1577, 0.0
    %v1586 = vld [vmem:[#allocation11] sm:$0xff]
    %v1587 = vld [vmem:[#allocation11 + $0x8] sm:$0xff]
    %v1588 = vld [vmem:[#allocation11 + $0x10] sm:$0xff]
    %v1589 = vld [vmem:[#allocation11 + $0x18] sm:$0xff]
    %v1590 = vld [vmem:[#allocation11 + $0x20] sm:$0xff]
    %v1591 = vld [vmem:[#allocation11 + $0x28] sm:$0xff]
    %v1592 = vld [vmem:[#allocation11 + $0x30] sm:$0xff]
    %v1593 = vld [vmem:[#allocation11 + $0x38] sm:$0xff]
    %v1594 = vld [vmem:[#allocation11 + $0x40] sm:$0xff]
    %v1595 = vld [vmem:[#allocation11 + $0x48] sm:$0xff]
    %v1596 = vld [vmem:[#allocation11 + $0x50] sm:$0xff]
    %v1597 = vld [vmem:[#allocation11 + $0x58] sm:$0xff]
    %v1598 = vld [vmem:[#allocation11 + $0x60] sm:$0xff]
    %v1599 = vld [vmem:[#allocation11 + $0x68] sm:$0xff]
    %v1600 = vld [vmem:[#allocation11 + $0x70] sm:$0xff]
    %v1601 = vld [vmem:[#allocation11 + $0x78] sm:$0xff]
    %v1602 = vld [vmem:[#allocation11 + $0x80] sm:$0xff]
    %v1603 = vld [vmem:[#allocation11 + $0x88] sm:$0xff]
    %v1604 = vld [vmem:[#allocation11 + $0x90] sm:$0xff]
    %v1605 = vld [vmem:[#allocation11 + $0x98] sm:$0xff]
    %v1606 = vld [vmem:[#allocation11 + $0xa0] sm:$0xff]
    %v1607 = vld [vmem:[#allocation11 + $0xa8] sm:$0xff]
    %v1608 = vld [vmem:[#allocation11 + $0xb0] sm:$0xff]
    %v1609 = vld [vmem:[#allocation11 + $0xb8] sm:$0xff]
    %v1610 = vld [vmem:[#allocation11 + $0xc0] sm:$0xff]
    %v1611 = vld [vmem:[#allocation11 + $0xc8] sm:$0xff]
    %v1612 = vld [vmem:[#allocation11 + $0xd0] sm:$0xff]
    %v1613 = vld [vmem:[#allocation11 + $0xd8] sm:$0xff]
    %v1614 = vld [vmem:[#allocation11 + $0xe0] sm:$0xff]
    %v1615 = vld [vmem:[#allocation11 + $0xe8] sm:$0xff]
    %v1616 = vld [vmem:[#allocation11 + $0xf0] sm:$0xff]
    %v1617 = vld [vmem:[#allocation11 + $0xf8] sm:$0xff]
    %v1618 = vld [vmem:[#allocation11 + $0x100] sm:$0xff]
    %v1619 = vld [vmem:[#allocation11 + $0x108] sm:$0xff]
    %v1620 = vld [vmem:[#allocation11 + $0x110] sm:$0xff]
    %v1621 = vld [vmem:[#allocation11 + $0x118] sm:$0xff]
    %v1622 = vld [vmem:[#allocation11 + $0x120] sm:$0xff]
    %v1623 = vld [vmem:[#allocation11 + $0x128] sm:$0xff]
    %v1624 = vld [vmem:[#allocation11 + $0x130] sm:$0xff]
    %v1625 = vld [vmem:[#allocation11 + $0x138] sm:$0xff]
    %v1626 = vld [vmem:[#allocation11 + $0x140] sm:$0xff]
    %v1627 = vld [vmem:[#allocation11 + $0x148] sm:$0xff]
    %v1628 = vld [vmem:[#allocation11 + $0x150] sm:$0xff]
    %v1629 = vld [vmem:[#allocation11 + $0x158] sm:$0xff]
    %v1630 = vld [vmem:[#allocation11 + $0x160] sm:$0xff]
    %v1631 = vld [vmem:[#allocation11 + $0x168] sm:$0xff]
    %v1632 = vld [vmem:[#allocation11 + $0x170] sm:$0xff]
    %v1633 = vld [vmem:[#allocation11 + $0x178] sm:$0xff]
    %v1634 = vld [vmem:[#allocation11 + $0x180] sm:$0xff]
    %v1635 = vld [vmem:[#allocation11 + $0x188] sm:$0xff]
    %v1636 = vld [vmem:[#allocation11 + $0x190] sm:$0xff]
    %v1637 = vld [vmem:[#allocation11 + $0x198] sm:$0xff]
    %v1638 = vld [vmem:[#allocation11 + $0x1a0] sm:$0xff]
    %v1639 = vld [vmem:[#allocation11 + $0x1a8] sm:$0xff]
    %v1640 = vld [vmem:[#allocation11 + $0x1b0] sm:$0xff]
    %v1641 = vld [vmem:[#allocation11 + $0x1b8] sm:$0xff]
    %v1642 = vld [vmem:[#allocation11 + $0x1c0] sm:$0xff]
    %v1643 = vld [vmem:[#allocation11 + $0x1c8] sm:$0xff]
    %v1644 = vld [vmem:[#allocation11 + $0x1d0] sm:$0xff]
    %v1645 = vld [vmem:[#allocation11 + $0x1d8] sm:$0xff]
    %v1646 = vld [vmem:[#allocation11 + $0x1e0] sm:$0xff]
    %v1647 = vld [vmem:[#allocation11 + $0x1e8] sm:$0xff]
    %v1648 = vld [vmem:[#allocation11 + $0x1f0] sm:$0xff]
    %v1649 = vld [vmem:[#allocation11 + $0x1f8] sm:$0xff]
    %v1650 = vld [vmem:[#allocation11 + $0x200] sm:$0xff]
    %v1651 = vld [vmem:[#allocation11 + $0x208] sm:$0xff]
    %v1652 = vld [vmem:[#allocation11 + $0x210] sm:$0xff]
    %v1653 = vld [vmem:[#allocation11 + $0x218] sm:$0xff]
    %v1654 = vld [vmem:[#allocation11 + $0x220] sm:$0xff]
    %v1655 = vld [vmem:[#allocation11 + $0x228] sm:$0xff]
    %v1656 = vld [vmem:[#allocation11 + $0x230] sm:$0xff]
    %v1657 = vld [vmem:[#allocation11 + $0x238] sm:$0xff]
    %v1658 = vld [vmem:[#allocation11 + $0x240] sm:$0xff]
    %v1659 = vld [vmem:[#allocation11 + $0x248] sm:$0xff]
    %v1660 = vld [vmem:[#allocation11 + $0x250] sm:$0xff]
    %v1661 = vld [vmem:[#allocation11 + $0x258] sm:$0xff]
    %v1662 = vld [vmem:[#allocation11 + $0x260] sm:$0xff]
    %v1663 = vld [vmem:[#allocation11 + $0x268] sm:$0xff]
    %v1664 = vld [vmem:[#allocation11 + $0x270] sm:$0xff]
    %v1665 = vld [vmem:[#allocation11 + $0x278] sm:$0xff]
    %v1666 = vld [vmem:[#allocation11 + $0x280] sm:$0xff]
    %v1667 = vld [vmem:[#allocation11 + $0x288] sm:$0xff]
    %v1668 = vld [vmem:[#allocation11 + $0x290] sm:$0xff]
    %v1669 = vld [vmem:[#allocation11 + $0x298] sm:$0xff]
    %v1670 = vld [vmem:[#allocation11 + $0x2a0] sm:$0xff]
    %v1671 = vld [vmem:[#allocation11 + $0x2a8] sm:$0xff]
    %v1672 = vld [vmem:[#allocation11 + $0x2b0] sm:$0xff]
    %v1673 = vld [vmem:[#allocation11 + $0x2b8] sm:$0xff]
    %v1674 = vld [vmem:[#allocation11 + $0x2c0] sm:$0xff]
    %v1675 = vld [vmem:[#allocation11 + $0x2c8] sm:$0xff]
    %v1676 = vld [vmem:[#allocation11 + $0x2d0] sm:$0xff]
    %v1677 = vld [vmem:[#allocation11 + $0x2d8] sm:$0xff]
    %v1678 = vld [vmem:[#allocation11 + $0x2e0] sm:$0xff]
    %v1679 = vld [vmem:[#allocation11 + $0x2e8] sm:$0xff]
    %v1680 = vld [vmem:[#allocation11 + $0x2f0] sm:$0xff]
    %v1681 = vld [vmem:[#allocation11 + $0x2f8] sm:$0xff]
    %v1682 = vld [vmem:[#allocation11 + $0x300] sm:$0xff]
    %v1683 = vld [vmem:[#allocation11 + $0x308] sm:$0xff]
    %v1684 = vld [vmem:[#allocation11 + $0x310] sm:$0xff]
    %v1685 = vld [vmem:[#allocation11 + $0x318] sm:$0xff]
    %v1686 = vld [vmem:[#allocation11 + $0x320] sm:$0xff]
    %v1687 = vld [vmem:[#allocation11 + $0x328] sm:$0xff]
    %v1688 = vld [vmem:[#allocation11 + $0x330] sm:$0xff]
    %v1689 = vld [vmem:[#allocation11 + $0x338] sm:$0xff]
    %v1690 = vld [vmem:[#allocation11 + $0x340] sm:$0xff]
    %v1691 = vld [vmem:[#allocation11 + $0x348] sm:$0xff]
    %v1692 = vld [vmem:[#allocation11 + $0x350] sm:$0xff]
    %v1693 = vld [vmem:[#allocation11 + $0x358] sm:$0xff]
    %v1694 = vld [vmem:[#allocation11 + $0x360] sm:$0xff]
    %v1695 = vld [vmem:[#allocation11 + $0x368] sm:$0xff]
    %v1696 = vld [vmem:[#allocation11 + $0x370] sm:$0xff]
    %v1697 = vld [vmem:[#allocation11 + $0x378] sm:$0xff]
    %v1698 = vld [vmem:[#allocation11 + $0x380] sm:$0xff]
    %v1699 = vld [vmem:[#allocation11 + $0x388] sm:$0xff]
    %v1700 = vld [vmem:[#allocation11 + $0x390] sm:$0xff]
    %v1701 = vld [vmem:[#allocation11 + $0x398] sm:$0xff]
    %v1702 = vld [vmem:[#allocation11 + $0x3a0] sm:$0xff]
    %v1703 = vld [vmem:[#allocation11 + $0x3a8] sm:$0xff]
    %v1704 = vld [vmem:[#allocation11 + $0x3b0] sm:$0xff]
    %v1705 = vld [vmem:[#allocation11 + $0x3b8] sm:$0xff]
    %v1706 = vld [vmem:[#allocation11 + $0x3c0] sm:$0xff]
    %v1707 = vld [vmem:[#allocation11 + $0x3c8] sm:$0xff]
    %v1708 = vld [vmem:[#allocation11 + $0x3d0] sm:$0xff]
    %v1709 = vld [vmem:[#allocation11 + $0x3d8] sm:$0xff]
    %v1710 = vld [vmem:[#allocation11 + $0x3e0] sm:$0xff]
    %v1711 = vld [vmem:[#allocation11 + $0x3e8] sm:$0xff]
    %v1712 = vld [vmem:[#allocation11 + $0x3f0] sm:$0xff]
    %v1713 = vld [vmem:[#allocation11 + $0x3f8] sm:$0xff]
    %v1714 = vld [vmem:[%s10] sm:$0x1]
    %v1716 = vlaneseq
    %v1717 = vshrl.u32 %v1716, 7
    %v1718 = vsub.s32 0, %v1717
    %v1719 = vrot.slane %v1714, %v1718
    %1721 = vmatprep.subr.mxu0 0.0
    %1722 = vmatpush1.msra.mxu0 %v1586
    %1723 = vmatprep.subr.mxu0 0.0
    %1724 = vmatpush1.msra.mxu0 %v1587
    %1725 = vmatprep.subr.mxu0 0.0
    %1726 = vmatpush1.msra.mxu0 %v1588
    %1727 = vmatprep.subr.mxu0 0.0
    %1728 = vmatpush1.msra.mxu0 %v1589
    %1729 = vmatprep.subr.mxu0 0.0
    %1730 = vmatpush1.msra.mxu0 %v1590
    %1731 = vmatprep.subr.mxu0 0.0
    %1732 = vmatpush1.msra.mxu0 %v1591
    %1733 = vmatprep.subr.mxu0 0.0
    %1734 = vmatpush1.msra.mxu0 %v1592
    %1735 = vmatprep.subr.mxu0 0.0
    %1736 = vmatpush1.msra.mxu0 %v1593
    %1737 = vmatprep.subr.mxu0 0.0
    %1738 = vmatpush1.msra.mxu0 %v1594
    %1739 = vmatprep.subr.mxu0 0.0
    %1740 = vmatpush1.msra.mxu0 %v1595
    %1741 = vmatprep.subr.mxu0 0.0
    %1742 = vmatpush1.msra.mxu0 %v1596
    %1743 = vmatprep.subr.mxu0 0.0
    %1744 = vmatpush1.msra.mxu0 %v1597
    %1745 = vmatprep.subr.mxu0 0.0
    %1746 = vmatpush1.msra.mxu0 %v1598
    %1747 = vmatprep.subr.mxu0 0.0
    %1748 = vmatpush1.msra.mxu0 %v1599
    %1749 = vmatprep.subr.mxu0 0.0
    %1750 = vmatpush1.msra.mxu0 %v1600
    %1751 = vmatprep.subr.mxu0 0.0
    %1752 = vmatpush1.msra.mxu0 %v1601
    %1753 = vmatprep.subr.mxu0 0.0
    %1754 = vmatpush1.msra.mxu0 %v1602
    %1755 = vmatprep.subr.mxu0 0.0
    %1756 = vmatpush1.msra.mxu0 %v1603
    %1757 = vmatprep.subr.mxu0 0.0
    %1758 = vmatpush1.msra.mxu0 %v1604
    %1759 = vmatprep.subr.mxu0 0.0
    %1760 = vmatpush1.msra.mxu0 %v1605
    %1761 = vmatprep.subr.mxu0 0.0
    %1762 = vmatpush1.msra.mxu0 %v1606
    %1763 = vmatprep.subr.mxu0 0.0
    %1764 = vmatpush1.msra.mxu0 %v1607
    %1765 = vmatprep.subr.mxu0 0.0
    %1766 = vmatpush1.msra.mxu0 %v1608
    %1767 = vmatprep.subr.mxu0 0.0
    %1768 = vmatpush1.msra.mxu0 %v1609
    %1769 = vmatprep.subr.mxu0 0.0
    %1770 = vmatpush1.msra.mxu0 %v1610
    %1771 = vmatprep.subr.mxu0 0.0
    %1772 = vmatpush1.msra.mxu0 %v1611
    %1773 = vmatprep.subr.mxu0 0.0
    %1774 = vmatpush1.msra.mxu0 %v1612
    %1775 = vmatprep.subr.mxu0 0.0
    %1776 = vmatpush1.msra.mxu0 %v1613
    %1777 = vmatprep.subr.mxu0 0.0
    %1778 = vmatpush1.msra.mxu0 %v1614
    %1779 = vmatprep.subr.mxu0 0.0
    %1780 = vmatpush1.msra.mxu0 %v1615
    %1781 = vmatprep.subr.mxu0 0.0
    %1782 = vmatpush1.msra.mxu0 %v1616
    %1783 = vmatprep.subr.mxu0 0.0
    %1784 = vmatpush1.msra.mxu0 %v1617
    %1785 = vmatprep.mubr.f32.mxu0 %v1579
    %1786 = vmatmul.mubr.f32.gmra.mrb[0].mxu0 %v1578
    %v1787 = vpop.f32.mrb[0].mxu0
    %v1788 = vadd.f32 %v1719, %v1787
    %v1789 = vpop.f32.mrb[0].mxu0
    %1790 = vdwg.mxu0
    %1791 = vmatprep.subr.mxu0 0.0
    %1792 = vmatpush1.msra.mxu0 %v1618
    %1793 = vmatprep.subr.mxu0 0.0
    %1794 = vmatpush1.msra.mxu0 %v1619
    %1795 = vmatprep.subr.mxu0 0.0
    %1796 = vmatpush1.msra.mxu0 %v1620
    %1797 = vmatprep.subr.mxu0 0.0
    %1798 = vmatpush1.msra.mxu0 %v1621
    %1799 = vmatprep.subr.mxu0 0.0
    %1800 = vmatpush1.msra.mxu0 %v1622
    %1801 = vmatprep.subr.mxu0 0.0
    %1802 = vmatpush1.msra.mxu0 %v1623
    %1803 = vmatprep.subr.mxu0 0.0
    %1804 = vmatpush1.msra.mxu0 %v1624
    %1805 = vmatprep.subr.mxu0 0.0
    %1806 = vmatpush1.msra.mxu0 %v1625
    %1807 = vmatprep.subr.mxu0 0.0
    %1808 = vmatpush1.msra.mxu0 %v1626
    %1809 = vmatprep.subr.mxu0 0.0
    %1810 = vmatpush1.msra.mxu0 %v1627
    %1811 = vmatprep.subr.mxu0 0.0
    %1812 = vmatpush1.msra.mxu0 %v1628
    %1813 = vmatprep.subr.mxu0 0.0
    %1814 = vmatpush1.msra.mxu0 %v1629
    %1815 = vmatprep.subr.mxu0 0.0
    %1816 = vmatpush1.msra.mxu0 %v1630
    %1817 = vmatprep.subr.mxu0 0.0
    %1818 = vmatpush1.msra.mxu0 %v1631
    %1819 = vmatprep.subr.mxu0 0.0
    %1820 = vmatpush1.msra.mxu0 %v1632
    %1821 = vmatprep.subr.mxu0 0.0
    %1822 = vmatpush1.msra.mxu0 %v1633
    %1823 = vmatprep.subr.mxu0 0.0
    %1824 = vmatpush1.msra.mxu0 %v1634
    %1825 = vmatprep.subr.mxu0 0.0
    %1826 = vmatpush1.msra.mxu0 %v1635
    %1827 = vmatprep.subr.mxu0 0.0
    %1828 = vmatpush1.msra.mxu0 %v1636
    %1829 = vmatprep.subr.mxu0 0.0
    %1830 = vmatpush1.msra.mxu0 %v1637
    %1831 = vmatprep.subr.mxu0 0.0
    %1832 = vmatpush1.msra.mxu0 %v1638
    %1833 = vmatprep.subr.mxu0 0.0
    %1834 = vmatpush1.msra.mxu0 %v1639
    %1835 = vmatprep.subr.mxu0 0.0
    %1836 = vmatpush1.msra.mxu0 %v1640
    %1837 = vmatprep.subr.mxu0 0.0
    %1838 = vmatpush1.msra.mxu0 %v1641
    %1839 = vmatprep.subr.mxu0 0.0
    %1840 = vmatpush1.msra.mxu0 %v1642
    %1841 = vmatprep.subr.mxu0 0.0
    %1842 = vmatpush1.msra.mxu0 %v1643
    %1843 = vmatprep.subr.mxu0 0.0
    %1844 = vmatpush1.msra.mxu0 %v1644
    %1845 = vmatprep.subr.mxu0 0.0
    %1846 = vmatpush1.msra.mxu0 %v1645
    %1847 = vmatprep.subr.mxu0 0.0
    %1848 = vmatpush1.msra.mxu0 %v1646
    %1849 = vmatprep.subr.mxu0 0.0
    %1850 = vmatpush1.msra.mxu0 %v1647
    %1851 = vmatprep.subr.mxu0 0.0
    %1852 = vmatpush1.msra.mxu0 %v1648
    %1853 = vmatprep.subr.mxu0 0.0
    %1854 = vmatpush1.msra.mxu0 %v1649
    %1855 = vmatprep.mubr.f32.mxu0 %v1581
    %1856 = vmatmul.mubr.f32.gmra.mrb[0].mxu0 %v1580
    %v1857 = vpop.f32.mrb[0].mxu0
    %v1858 = vadd.f32 %v1788, %v1857
    %v1859 = vpop.f32.mrb[0].mxu0
    %1860 = vdwg.mxu0
    %1861 = vmatprep.subr.mxu0 0.0
    %1862 = vmatpush1.msra.mxu0 %v1650
    %1863 = vmatprep.subr.mxu0 0.0
    %1864 = vmatpush1.msra.mxu0 %v1651
    %1865 = vmatprep.subr.mxu0 0.0
    %1866 = vmatpush1.msra.mxu0 %v1652
    %1867 = vmatprep.subr.mxu0 0.0
    %1868 = vmatpush1.msra.mxu0 %v1653
    %1869 = vmatprep.subr.mxu0 0.0
    %1870 = vmatpush1.msra.mxu0 %v1654
    %1871 = vmatprep.subr.mxu0 0.0
    %1872 = vmatpush1.msra.mxu0 %v1655
    %1873 = vmatprep.subr.mxu0 0.0
    %1874 = vmatpush1.msra.mxu0 %v1656
    %1875 = vmatprep.subr.mxu0 0.0
    %1876 = vmatpush1.msra.mxu0 %v1657
    %1877 = vmatprep.subr.mxu0 0.0
    %1878 = vmatpush1.msra.mxu0 %v1658
    %1879 = vmatprep.subr.mxu0 0.0
    %1880 = vmatpush1.msra.mxu0 %v1659
    %1881 = vmatprep.subr.mxu0 0.0
    %1882 = vmatpush1.msra.mxu0 %v1660
    %1883 = vmatprep.subr.mxu0 0.0
    %1884 = vmatpush1.msra.mxu0 %v1661
    %1885 = vmatprep.subr.mxu0 0.0
    %1886 = vmatpush1.msra.mxu0 %v1662
    %1887 = vmatprep.subr.mxu0 0.0
    %1888 = vmatpush1.msra.mxu0 %v1663
    %1889 = vmatprep.subr.mxu0 0.0
    %1890 = vmatpush1.msra.mxu0 %v1664
    %1891 = vmatprep.subr.mxu0 0.0
    %1892 = vmatpush1.msra.mxu0 %v1665
    %1893 = vmatprep.subr.mxu0 0.0
    %1894 = vmatpush1.msra.mxu0 %v1666
    %1895 = vmatprep.subr.mxu0 0.0
    %1896 = vmatpush1.msra.mxu0 %v1667
    %1897 = vmatprep.subr.mxu0 0.0
    %1898 = vmatpush1.msra.mxu0 %v1668
    %1899 = vmatprep.subr.mxu0 0.0
    %1900 = vmatpush1.msra.mxu0 %v1669
    %1901 = vmatprep.subr.mxu0 0.0
    %1902 = vmatpush1.msra.mxu0 %v1670
    %1903 = vmatprep.subr.mxu0 0.0
    %1904 = vmatpush1.msra.mxu0 %v1671
    %1905 = vmatprep.subr.mxu0 0.0
    %1906 = vmatpush1.msra.mxu0 %v1672
    %1907 = vmatprep.subr.mxu0 0.0
    %1908 = vmatpush1.msra.mxu0 %v1673
    %1909 = vmatprep.subr.mxu0 0.0
    %1910 = vmatpush1.msra.mxu0 %v1674
    %1911 = vmatprep.subr.mxu0 0.0
    %1912 = vmatpush1.msra.mxu0 %v1675
    %1913 = vmatprep.subr.mxu0 0.0
    %1914 = vmatpush1.msra.mxu0 %v1676
    %1915 = vmatprep.subr.mxu0 0.0
    %1916 = vmatpush1.msra.mxu0 %v1677
    %1917 = vmatprep.subr.mxu0 0.0
    %1918 = vmatpush1.msra.mxu0 %v1678
    %1919 = vmatprep.subr.mxu0 0.0
    %1920 = vmatpush1.msra.mxu0 %v1679
    %1921 = vmatprep.subr.mxu0 0.0
    %1922 = vmatpush1.msra.mxu0 %v1680
    %1923 = vmatprep.subr.mxu0 0.0
    %1924 = vmatpush1.msra.mxu0 %v1681
    %1925 = vmatprep.mubr.f32.mxu0 %v1583
    %1926 = vmatmul.mubr.f32.gmra.mrb[0].mxu0 %v1582
    %v1927 = vpop.f32.mrb[0].mxu0
    %v1928 = vadd.f32 %v1858, %v1927
    %v1929 = vpop.f32.mrb[0].mxu0
    %1930 = vdwg.mxu0
    %1931 = vmatprep.subr.mxu0 0.0
    %1932 = vmatpush1.msra.mxu0 %v1682
    %1933 = vmatprep.subr.mxu0 0.0
    %1934 = vmatpush1.msra.mxu0 %v1683
    %1935 = vmatprep.subr.mxu0 0.0
    %1936 = vmatpush1.msra.mxu0 %v1684
    %1937 = vmatprep.subr.mxu0 0.0
    %1938 = vmatpush1.msra.mxu0 %v1685
    %1939 = vmatprep.subr.mxu0 0.0
    %1940 = vmatpush1.msra.mxu0 %v1686
    %1941 = vmatprep.subr.mxu0 0.0
    %1942 = vmatpush1.msra.mxu0 %v1687
    %1943 = vmatprep.subr.mxu0 0.0
    %1944 = vmatpush1.msra.mxu0 %v1688
    %1945 = vmatprep.subr.mxu0 0.0
    %1946 = vmatpush1.msra.mxu0 %v1689
    %1947 = vmatprep.subr.mxu0 0.0
    %1948 = vmatpush1.msra.mxu0 %v1690
    %1949 = vmatprep.subr.mxu0 0.0
    %1950 = vmatpush1.msra.mxu0 %v1691
    %1951 = vmatprep.subr.mxu0 0.0
    %1952 = vmatpush1.msra.mxu0 %v1692
    %1953 = vmatprep.subr.mxu0 0.0
    %1954 = vmatpush1.msra.mxu0 %v1693
    %1955 = vmatprep.subr.mxu0 0.0
    %1956 = vmatpush1.msra.mxu0 %v1694
    %1957 = vmatprep.subr.mxu0 0.0
    %1958 = vmatpush1.msra.mxu0 %v1695
    %1959 = vmatprep.subr.mxu0 0.0
    %1960 = vmatpush1.msra.mxu0 %v1696
    %1961 = vmatprep.subr.mxu0 0.0
    %1962 = vmatpush1.msra.mxu0 %v1697
    %1963 = vmatprep.subr.mxu0 0.0
    %1964 = vmatpush1.msra.mxu0 %v1698
    %1965 = vmatprep.subr.mxu0 0.0
    %1966 = vmatpush1.msra.mxu0 %v1699
    %1967 = vmatprep.subr.mxu0 0.0
    %1968 = vmatpush1.msra.mxu0 %v1700
    %1969 = vmatprep.subr.mxu0 0.0
    %1970 = vmatpush1.msra.mxu0 %v1701
    %1971 = vmatprep.subr.mxu0 0.0
    %1972 = vmatpush1.msra.mxu0 %v1702
    %1973 = vmatprep.subr.mxu0 0.0
    %1974 = vmatpush1.msra.mxu0 %v1703
    %1975 = vmatprep.subr.mxu0 0.0
    %1976 = vmatpush1.msra.mxu0 %v1704
    %1977 = vmatprep.subr.mxu0 0.0
    %1978 = vmatpush1.msra.mxu0 %v1705
    %1979 = vmatprep.subr.mxu0 0.0
    %1980 = vmatpush1.msra.mxu0 %v1706
    %1981 = vmatprep.subr.mxu0 0.0
    %1982 = vmatpush1.msra.mxu0 %v1707
    %1983 = vmatprep.subr.mxu0 0.0
    %1984 = vmatpush1.msra.mxu0 %v1708
    %1985 = vmatprep.subr.mxu0 0.0
    %1986 = vmatpush1.msra.mxu0 %v1709
    %1987 = vmatprep.subr.mxu0 0.0
    %1988 = vmatpush1.msra.mxu0 %v1710
    %1989 = vmatprep.subr.mxu0 0.0
    %1990 = vmatpush1.msra.mxu0 %v1711
    %1991 = vmatprep.subr.mxu0 0.0
    %1992 = vmatpush1.msra.mxu0 %v1712
    %1993 = vmatprep.subr.mxu0 0.0
    %1994 = vmatpush1.msra.mxu0 %v1713
    %1995 = vmatprep.mubr.f32.mxu0 %v1585
    %1996 = vmatmul.mubr.f32.gmra.mrb[0].mxu0 %v1584
    %v1997 = vpop.f32.mrb[0].mxu0
    %v1998 = vadd.f32 %v1928, %v1997
    %v1999 = vpop.f32.mrb[0].mxu0
    %2000 = vdwg.mxu0
    %v2001 = vmax.f32 %v1998, 0.0
    %v2002 = vld [vmem:[%s11] sm:$0x3]
    %2004 = vrot.lane.b32.xlu0 %v2002, 4
    %v2005 = vpop.permute.xlu0 %2004
    %v2007 = vsel %vm133, %v2002, %v2005
    %2008 = vxpose.xlu0.b32.start [1/16] %v1149, 128
    %2009 = vxpose.xlu0.b32.cont [2/16] 0.0, 128
    %2010 = vxpose.xlu0.b32.cont [3/16] 0.0, 128
    %2011 = vxpose.xlu0.b32.cont [4/16] 0.0, 128
    %2012 = vxpose.xlu0.b32.cont [5/16] 0.0, 128
    %2013 = vxpose.xlu0.b32.cont [6/16] 0.0, 128
    %2014 = vxpose.xlu0.b32.cont [7/16] 0.0, 128
    %2015 = vxpose.xlu0.b32.cont [8/16] 0.0, 128
    %2016 = vxpose.xlu0.b32.cont [9/16] 0.0, 128
    %2017 = vxpose.xlu0.b32.cont [10/16] 0.0, 128
    %2018 = vxpose.xlu0.b32.cont [11/16] 0.0, 128
    %2019 = vxpose.xlu0.b32.cont [12/16] 0.0, 128
    %2020 = vxpose.xlu0.b32.cont [13/16] 0.0, 128
    %2021 = vxpose.xlu0.b32.cont [14/16] 0.0, 128
    %2022 = vxpose.xlu0.b32.cont [15/16] 0.0, 128
    %2023 = vxpose.xlu0.b32.end [16/16] 0.0, 128
    %v2024 = vpop.trf.xlu0
    %v2025 = vpop.trf.xlu0
    %v2026 = vpop.trf.xlu0
    %v2027 = vpop.trf.xlu0
    %v2028 = vpop.trf.xlu0
    %v2029 = vpop.trf.xlu0
    %v2030 = vpop.trf.xlu0
    %v2031 = vpop.trf.xlu0
    %v2032 = vpop.trf.xlu0
    %v2033 = vpop.trf.xlu0
    %v2034 = vpop.trf.xlu0
    %v2035 = vpop.trf.xlu0
    %v2036 = vpop.trf.xlu0
    %v2037 = vpop.trf.xlu0
    %v2038 = vpop.trf.xlu0
    %v2039 = vpop.trf.xlu0
    %v2040 = vlaneseq
    %v2041 = vshrl.u32 %v2040, 7
    %v2042 = vsub.s32 0, %v2041
    %v2043 = vrot.slane %v2007, %v2042
    %v2044 = vmul.f32 %v2024, %v2043
    %v2045 = vmul.f32 %v286, %v2007
    %v2046 = vlaneseq
    %v2047 = vshrl.u32 %v2046, 7
    %v2048 = vsub.s32 1, %v2047
    %v2049 = vrot.slane %v2045, %v2048
    %v2050 = vadd.f32 %v2044, %v2049
    %2051 = vxpose.xlu0.b32.start [1/16] %v2001, 128
    %2052 = vxpose.xlu0.b32.cont [2/16] 0.0, 128
    %2053 = vxpose.xlu0.b32.cont [3/16] 0.0, 128
    %2054 = vxpose.xlu0.b32.cont [4/16] 0.0, 128
    %2055 = vxpose.xlu0.b32.cont [5/16] 0.0, 128
    %2056 = vxpose.xlu0.b32.cont [6/16] 0.0, 128
    %2057 = vxpose.xlu0.b32.cont [7/16] 0.0, 128
    %2058 = vxpose.xlu0.b32.cont [8/16] 0.0, 128
    %2059 = vxpose.xlu0.b32.cont [9/16] 0.0, 128
    %2060 = vxpose.xlu0.b32.cont [10/16] 0.0, 128
    %2061 = vxpose.xlu0.b32.cont [11/16] 0.0, 128
    %2062 = vxpose.xlu0.b32.cont [12/16] 0.0, 128
    %2063 = vxpose.xlu0.b32.cont [13/16] 0.0, 128
    %2064 = vxpose.xlu0.b32.cont [14/16] 0.0, 128
    %2065 = vxpose.xlu0.b32.cont [15/16] 0.0, 128
    %2066 = vxpose.xlu0.b32.end [16/16] 0.0, 128
    %v2067 = vpop.trf.xlu0
    %v2068 = vpop.trf.xlu0
    %v2069 = vpop.trf.xlu0
    %v2070 = vpop.trf.xlu0
    %v2071 = vpop.trf.xlu0
    %v2072 = vpop.trf.xlu0
    %v2073 = vpop.trf.xlu0
    %v2074 = vpop.trf.xlu0
    %v2075 = vpop.trf.xlu0
    %v2076 = vpop.trf.xlu0
    %v2077 = vpop.trf.xlu0
    %v2078 = vpop.trf.xlu0
    %v2079 = vpop.trf.xlu0
    %v2080 = vpop.trf.xlu0
    %v2081 = vpop.trf.xlu0
    %v2082 = vpop.trf.xlu0
    %2084 = vrot.lane.b32.xlu0 %v2050, 124
    %v2085 = vpop.permute.xlu0 %2084
    %2088 = vrot.lane.b32.xlu0 %v2067, 124
    %v2089 = vpop.permute.xlu0 %2088
    %2090 = vrot.lane.b32.xlu0 %v2067, 4
    %v2091 = vpop.permute.xlu0 %2090
    %2092 = vrot.lane.b32.xlu0 %v2089, 4
    %v2093 = vpop.permute.xlu0 %2092
    %v2096 = vsel %vm133, %v2050, %v2091
    %v2097 = vsel %vm133, %v2085, %v2093
    %vm2098 = vcmask 58368
    %2099 = vst.msk [vmem:[#allocation13] sm:$0x3] %vm2098, %v2096
    %2100 = vst.msk [vmem:[#allocation13 + $0x2] sm:$0x3] %vm2098, %v2097
    // Predicated region
    $region74: #{_lambda_.1} parent=1 // pred_check
      _
    $region75: #{_lambda_.1} parent=1 // pred_check_branch
      %2102 = sbr.rel (0) target = $region77
    $region76: #{_lambda_.1} parent=1 // pred_region
      _
    $region77: #{_lambda_.1} parent=1 // pred_fallthru
      _
    // Predicated region
    $region78: #{_lambda_.1} parent=1 // pred_check
      _
    $region79: #{_lambda_.1} parent=1 // pred_check_branch
      %2104 = sbr.rel (0) target = $region81
    $region80: #{_lambda_.1} parent=1 // pred_region
      %s2106 = ssub.s32 64, 64
      %2107 = vsyncadd [#allocation4], %s2106
      %s2108 = sshll.u32 [#allocation13], 4
      %s2109 = int_to_ptr.vmem [resolvable:$true] %s2108
      %2114 = dma.vmem_to_hbm [thread:$0]  %s2109, 64, %s13, [#allocation4], 32, 32, 2
    $region81: #{_lambda_.1} parent=1 // pred_fallthru
      _
    // Predicated region
    $region82: #{_lambda_.1} parent=1 // pred_check
      _
    $region83: #{_lambda_.1} parent=1 // pred_check_branch
      %2116 = sbr.rel (0) target = $region85
    $region84: #{_lambda_.1} parent=1 // pred_region
      _
    $region85: #{_lambda_.1} parent=1 // pred_fallthru
      _
    // Predicated region
    $region86: #{_lambda_.1} parent=1 // pred_check
      _
    $region87: #{_lambda_.1} parent=1 // pred_check_branch
      %2118 = sbr.rel (0) target = $region89
    $region88: #{_lambda_.1} parent=1 // pred_region
      %2119 = dma.done [#allocation4], 64
    $region89: #{_lambda_.1} parent=1 // pred_fallthru
      _
    %2120 = vsyncpa [#allocation3], 1
    %2121 = vsyncpa [#allocation6], 1
    %2122 = vsyncpa [#allocation9], 1
    %2123 = vsyncpa [#allocation12], 1
    %2124 = vsyncpa [#allocation4], 1

</llo_original>
